<compile_context>
chip_gen: v7x
topology: tpu7x:2x2x1
jax: 0.10.0
libtpu: 0.0.40
codegen_flags: <defaults>
</compile_context>

<pallas_src>
import jax
import jax.numpy as jnp
from jax.experimental import pallas as pl
from jax.experimental.pallas import tpu as pltpu

SELU_ALPHA = 1.6732632423543772
SELU_SCALE = 1.0507009873554805
_TAPS = (3, 4, 5)


def _selu(x):
    return SELU_SCALE * jnp.where(x > 0, x, SELU_ALPHA * (jnp.exp(x) - 1.0))


def cnn_sentence_kernel(x_ref, w_ref, b1_ref, b2_ref, b3_ref,
                        fcw1_ref, fcw2_ref, fcw3_ref, fcb_ref, out_ref):
    # x_ref:    (Bn, C, L)   input tile in the module's NCL layout (f32)
    # w_ref:    (C, 12F)     all conv taps fused (bf16)
    # bK_ref:   (1, F)       conv biases (f32)
    # fcwK_ref: (F, n_class) FC weight slices (f32); fcb_ref: (1, n_class)
    # out_ref:  (Bn, n_class)
    bn, c, l = x_ref.shape
    f = b1_ref.shape[1]
    tot_f = w_ref.shape[1]

    # NCL -> NLC in-kernel (XLU), then one fused bf16 matmul over full length.
    xt = jnp.transpose(x_ref[...], (0, 2, 1))                 # (Bn, L, C) f32
    x2d = xt.reshape(bn * l, c).astype(jnp.bfloat16)
    y = jnp.dot(x2d, w_ref[...], preferred_element_type=jnp.float32)
    y = y.reshape(bn, l, tot_f)                               # (Bn, L, 12F) f32

    # Per-tap shifted adds in the narrow F domain, then max-pool over time.
    pooled = []
    off = 0
    for k in _TAPS:
        lout = l - k + 1
        acc = y[:, 0:lout, off:off + f]
        for j in range(1, k):
            acc = acc + y[:, j:j + lout, off + j * f:off + (j + 1) * f]
        pooled.append(jnp.max(acc, axis=1))                   # (Bn, F)
        off += k * f

    # Bias + SELU after the pool (bias is time-independent, SELU is monotone).
    f1 = _selu(pooled[0] + b1_ref[...])
    f2 = _selu(pooled[1] + b2_ref[...])
    f3 = _selu(pooled[2] + b3_ref[...])

    # TODO(synk): dropout is identity at inference; training-mode dropout not implemented.
    out = (jnp.dot(f1, fcw1_ref[...], preferred_element_type=jnp.float32)
           + jnp.dot(f2, fcw2_ref[...], preferred_element_type=jnp.float32)
           + jnp.dot(f3, fcw3_ref[...], preferred_element_type=jnp.float32)
           + fcb_ref[...])
    out_ref[...] = out


def _choose_block_n(n, c, l, tot_f):
    # Per-row working set (f32): double-buffered x tile + transposed copy +
    # fused conv activations (with headroom for shift/max temporaries).
    bytes_per_row = 2 * c * l * 4 + c * l * 4 + 3 * l * tot_f * 4
    block_n = (8 * 1024 * 1024) // max(bytes_per_row, 1)
    block_n = max(8, min(512, (block_n // 8) * 8))
    # Never tile larger than the (8-padded) batch itself.
    n_pad8 = ((n + 7) // 8) * 8
    return min(block_n, n_pad8)


def cnn_sentence_classifier(x_ncl, params):
    """x_ncl: (N, C, L) float32 -> (N, n_class) float32."""
    w1, b1, w2, b2, w3, b3, fc_w, fc_b = params
    N, C, L = x_ncl.shape
    F = w1.shape[0]
    n_class = fc_w.shape[0]
    TOT_F = sum(_TAPS) * F                                    # 12F

    # Fuse all conv taps into one (C, 12F) bf16 weight: tap j of conv k lives
    # in columns off_k + j*F : off_k + (j+1)*F (matching the kernel).
    def tap_block(w):                                         # (F, C, k) -> (C, k*F)
        k = w.shape[-1]
        return jnp.transpose(w, (1, 2, 0)).reshape(C, k * F)

    w_all = jnp.concatenate(
        [tap_block(w1), tap_block(w2), tap_block(w3)], axis=1
    ).astype(jnp.bfloat16)                                    # (C, 12F)

    b1k = b1.reshape(1, F).astype(jnp.float32)
    b2k = b2.reshape(1, F).astype(jnp.float32)
    b3k = b3.reshape(1, F).astype(jnp.float32)
    fcw1 = jnp.transpose(fc_w[:, 0:F]).astype(jnp.float32)    # (F, n_class)
    fcw2 = jnp.transpose(fc_w[:, F:2 * F]).astype(jnp.float32)
    fcw3 = jnp.transpose(fc_w[:, 2 * F:3 * F]).astype(jnp.float32)
    fcb = fc_b.reshape(1, n_class).astype(jnp.float32)

    # Batch tiling: pad N up to a multiple of the tile so ragged batches never
    # force a single oversized block.
    block_n = _choose_block_n(N, C, L, TOT_F)
    n_pad = (-N) % block_n
    x_in = x_ncl.astype(jnp.float32)
    if n_pad:
        x_in = jnp.pad(x_in, ((0, n_pad), (0, 0), (0, 0)))
    Np = N + n_pad

    const = lambda shape: pl.BlockSpec(shape, lambda i, _s=shape: (0,) * len(_s))

    out = pl.pallas_call(
        cnn_sentence_kernel,
        out_shape=jax.ShapeDtypeStruct((Np, n_class), jnp.float32),
        grid=(Np // block_n,),
        in_specs=[
            pl.BlockSpec((block_n, C, L), lambda i: (i, 0, 0)),
            const((C, TOT_F)),
            const((1, F)), const((1, F)), const((1, F)),
            const((F, n_class)), const((F, n_class)), const((F, n_class)),
            const((1, n_class)),
        ],
        out_specs=pl.BlockSpec((block_n, n_class), lambda i: (i, 0)),
        compiler_params=pltpu.CompilerParams(
            dimension_semantics=("parallel",),
            vmem_limit_bytes=32 * 1024 * 1024),
    )(x_in, w_all, b1k, b2k, b3k, fcw1, fcw2, fcw3, fcb)

    return out[:N]


def _reference(x_ncl, params):
    """Pure-JAX f32 reference of the PyTorch forward (inference mode)."""
    w1, b1, w2, b2, w3, b3, fc_w, fc_b = params
    x = jnp.transpose(x_ncl, (0, 2, 1))  # (N, L, C)
    N, L, C = x.shape

    def conv(xs, w, b):  # w: (F, C, k)
        Fk, _, k = w.shape
        Lout = L - k + 1
        out = jnp.zeros((N, Lout, Fk), jnp.float32)
        for j in range(k):
            out = out + jnp.einsum('nlc,fc->nlf', xs[:, j:j + Lout, :], w[:, :, j])
        return out + b

    def block(w, b):
        y = _selu(conv(x, w, b))
        return jnp.max(y, axis=1)

    feat = jnp.concatenate([block(w1, b1), block(w2, b2), block(w3, b3)], axis=1)
    return feat @ fc_w.T + fc_b


def init_params(key, wv_dims, kernels, n_class):
    ks = jax.random.split(key, 8)

    def u(k, shape, fan_in):
        bound = 1.0 / jnp.sqrt(fan_in)
        return jax.random.uniform(k, shape, jnp.float32, -bound, bound)

    w1 = u(ks[0], (kernels, wv_dims, 3), wv_dims * 3)
    b1 = u(ks[1], (kernels,), wv_dims * 3)
    w2 = u(ks[2], (kernels, wv_dims, 4), wv_dims * 4)
    b2 = u(ks[3], (kernels,), wv_dims * 4)
    w3 = u(ks[4], (kernels, wv_dims, 5), wv_dims * 5)
    b3 = u(ks[5], (kernels,), wv_dims * 5)
    fc_w = u(ks[6], (n_class, kernels * 3), kernels * 3)
    fc_b = u(ks[7], (n_class,), kernels * 3)
    return (w1, b1, w2, b2, w3, b3, fc_w, fc_b)


if __name__ == "__main__":
    # Small shapes consistent with the module: N=2, C=wv_dims=32, L=16,
    # kernels=16, n_class=4.
    N, C, L = 2, 32, 16
    kernels, n_class = 16, 4

    key = jax.random.PRNGKey(0)
    kx, kp = jax.random.split(key)
    x = jax.random.normal(kx, (N, C, L), jnp.float32)
    params = init_params(kp, C, kernels, n_class)

    out = cnn_sentence_classifier(x, params)
    out = jax.block_until_ready(out)

    ref = _reference(x, params)
    assert out.shape == (N, n_class)
    # bf16 matmul inputs -> relaxed tolerance vs the f32 reference.
    assert jnp.allclose(out, ref, atol=3e-2, rtol=3e-2), "mismatch vs reference"
    print("KERNEL_OK")
</pallas_src>

<mosaic_0001>
module attributes {stable_mosaic.version = 11 : i64} {
  func.func @cnn_sentence_kernel(%arg0: i32, %arg1: memref<8x32x16xf32, #tpu.memory_space<vmem>>, %arg2: memref<32x192xbf16, #tpu.memory_space<vmem>>, %arg3: memref<1x16xf32, #tpu.memory_space<vmem>>, %arg4: memref<1x16xf32, #tpu.memory_space<vmem>>, %arg5: memref<1x16xf32, #tpu.memory_space<vmem>>, %arg6: memref<16x4xf32, #tpu.memory_space<vmem>>, %arg7: memref<16x4xf32, #tpu.memory_space<vmem>>, %arg8: memref<16x4xf32, #tpu.memory_space<vmem>>, %arg9: memref<1x4xf32, #tpu.memory_space<vmem>>, %arg10: memref<8x4xf32, #tpu.memory_space<vmem>>) attributes {dimension_semantics = [#tpu.dimension_semantics<parallel>], iteration_bounds = array<i64: 1>, scalar_prefetch = 0 : i64, scratch_operands = 0 : i64, tpu.core_type = #tpu.core_type<tc>, window_params = [{transform_indices = @transform_0, window_bounds = array<i64: 8, 32, 16>}, {pipeline_mode = #tpu.pipeline_mode<synchronous>, transform_indices = @transform_1, window_bounds = array<i64: 32, 192>}, {pipeline_mode = #tpu.pipeline_mode<synchronous>, transform_indices = @transform_2, window_bounds = array<i64: 1, 16>}, {pipeline_mode = #tpu.pipeline_mode<synchronous>, transform_indices = @transform_3, window_bounds = array<i64: 1, 16>}, {pipeline_mode = #tpu.pipeline_mode<synchronous>, transform_indices = @transform_4, window_bounds = array<i64: 1, 16>}, {pipeline_mode = #tpu.pipeline_mode<synchronous>, transform_indices = @transform_5, window_bounds = array<i64: 16, 4>}, {pipeline_mode = #tpu.pipeline_mode<synchronous>, transform_indices = @transform_6, window_bounds = array<i64: 16, 4>}, {pipeline_mode = #tpu.pipeline_mode<synchronous>, transform_indices = @transform_7, window_bounds = array<i64: 16, 4>}, {pipeline_mode = #tpu.pipeline_mode<synchronous>, transform_indices = @transform_8, window_bounds = array<i64: 1, 4>}, {transform_indices = @transform_9, window_bounds = array<i64: 8, 4>}]} {
    %c0 = arith.constant 0 : index
    %c0_0 = arith.constant 0 : index
    %c0_1 = arith.constant 0 : index
    %0 = vector.load %arg1[%c0, %c0_0, %c0_1] : memref<8x32x16xf32, #tpu.memory_space<vmem>>, vector<8x32x16xf32>
    %1 = tpu.transpose %0, [0, 2, 1] : vector<8x32x16xf32> -> vector<8x16x32xf32>
    %2 = vector.shape_cast %1 : vector<8x16x32xf32> to vector<128x32xf32>
    %3 = arith.truncf %2 : vector<128x32xf32> to vector<128x32xbf16>
    %c0_2 = arith.constant 0 : index
    %c0_3 = arith.constant 0 : index
    %4 = vector.load %arg2[%c0_2, %c0_3] : memref<32x192xbf16, #tpu.memory_space<vmem>>, vector<32x192xbf16>
    %cst = arith.constant dense<0.000000e+00> : vector<128x192xf32>
    %5 = tpu.matmul %3, %4, %cst {dimension_numbers = #tpu.dot_dimension_numbers<[1], [0], [0], [1], [0, 0, 1, 1], [], []>} : vector<128x32xbf16>, vector<32x192xbf16>, vector<128x192xf32> -> vector<128x192xf32>
    %6 = vector.shape_cast %5 : vector<128x192xf32> to vector<8x16x192xf32>
    %7 = vector.extract_strided_slice %6 {offsets = [0, 0, 0], sizes = [8, 14, 16], strides = [1, 1, 1]} : vector<8x16x192xf32> to vector<8x14x16xf32>
    %8 = vector.extract_strided_slice %6 {offsets = [0, 1, 16], sizes = [8, 14, 16], strides = [1, 1, 1]} : vector<8x16x192xf32> to vector<8x14x16xf32>
    %9 = arith.addf %7, %8 : vector<8x14x16xf32>
    %10 = vector.extract_strided_slice %6 {offsets = [0, 2, 32], sizes = [8, 14, 16], strides = [1, 1, 1]} : vector<8x16x192xf32> to vector<8x14x16xf32>
    %11 = arith.addf %9, %10 : vector<8x14x16xf32>
    %cst_4 = arith.constant dense<0xFF800000> : vector<8x16xf32>
    %12 = vector.multi_reduction <maximumf>, %11, %cst_4 [1] : vector<8x14x16xf32> to vector<8x16xf32>
    %13 = vector.extract_strided_slice %6 {offsets = [0, 0, 48], sizes = [8, 13, 16], strides = [1, 1, 1]} : vector<8x16x192xf32> to vector<8x13x16xf32>
    %14 = vector.extract_strided_slice %6 {offsets = [0, 1, 64], sizes = [8, 13, 16], strides = [1, 1, 1]} : vector<8x16x192xf32> to vector<8x13x16xf32>
    %15 = arith.addf %13, %14 : vector<8x13x16xf32>
    %16 = vector.extract_strided_slice %6 {offsets = [0, 2, 80], sizes = [8, 13, 16], strides = [1, 1, 1]} : vector<8x16x192xf32> to vector<8x13x16xf32>
    %17 = arith.addf %15, %16 : vector<8x13x16xf32>
    %18 = vector.extract_strided_slice %6 {offsets = [0, 3, 96], sizes = [8, 13, 16], strides = [1, 1, 1]} : vector<8x16x192xf32> to vector<8x13x16xf32>
    %19 = arith.addf %17, %18 : vector<8x13x16xf32>
    %cst_5 = arith.constant dense<0xFF800000> : vector<8x16xf32>
    %20 = vector.multi_reduction <maximumf>, %19, %cst_5 [1] : vector<8x13x16xf32> to vector<8x16xf32>
    %21 = vector.extract_strided_slice %6 {offsets = [0, 0, 112], sizes = [8, 12, 16], strides = [1, 1, 1]} : vector<8x16x192xf32> to vector<8x12x16xf32>
    %22 = vector.extract_strided_slice %6 {offsets = [0, 1, 128], sizes = [8, 12, 16], strides = [1, 1, 1]} : vector<8x16x192xf32> to vector<8x12x16xf32>
    %23 = arith.addf %21, %22 : vector<8x12x16xf32>
    %24 = vector.extract_strided_slice %6 {offsets = [0, 2, 144], sizes = [8, 12, 16], strides = [1, 1, 1]} : vector<8x16x192xf32> to vector<8x12x16xf32>
    %25 = arith.addf %23, %24 : vector<8x12x16xf32>
    %26 = vector.extract_strided_slice %6 {offsets = [0, 3, 160], sizes = [8, 12, 16], strides = [1, 1, 1]} : vector<8x16x192xf32> to vector<8x12x16xf32>
    %27 = arith.addf %25, %26 : vector<8x12x16xf32>
    %28 = vector.extract_strided_slice %6 {offsets = [0, 4, 176], sizes = [8, 12, 16], strides = [1, 1, 1]} : vector<8x16x192xf32> to vector<8x12x16xf32>
    %29 = arith.addf %27, %28 : vector<8x12x16xf32>
    %cst_6 = arith.constant dense<0xFF800000> : vector<8x16xf32>
    %30 = vector.multi_reduction <maximumf>, %29, %cst_6 [1] : vector<8x12x16xf32> to vector<8x16xf32>
    %c0_7 = arith.constant 0 : index
    %c0_8 = arith.constant 0 : index
    %31 = vector.load %arg3[%c0_7, %c0_8] : memref<1x16xf32, #tpu.memory_space<vmem>>, vector<1x16xf32>
    %32 = vector.broadcast %31 : vector<1x16xf32> to vector<8x16xf32>
    %33 = arith.addf %12, %32 : vector<8x16xf32>
    %cst_9 = arith.constant 0.000000e+00 : f32
    %34 = vector.broadcast %cst_9 : f32 to vector<8x16xf32>
    %35 = arith.cmpf ogt, %33, %34 : vector<8x16xf32>
    %36 = math.exp %33 : vector<8x16xf32>
    %cst_10 = arith.constant 1.000000e+00 : f32
    %37 = vector.broadcast %cst_10 : f32 to vector<8x16xf32>
    %38 = arith.subf %36, %37 : vector<8x16xf32>
    %cst_11 = arith.constant 1.67326319 : f32
    %39 = vector.broadcast %cst_11 : f32 to vector<8x16xf32>
    %40 = arith.mulf %39, %38 : vector<8x16xf32>
    %41 = arith.select %35, %33, %40 : vector<8x16xi1>, vector<8x16xf32>
    %cst_12 = arith.constant 1.05070102 : f32
    %42 = vector.broadcast %cst_12 : f32 to vector<8x16xf32>
    %43 = arith.mulf %42, %41 : vector<8x16xf32>
    %c0_13 = arith.constant 0 : index
    %c0_14 = arith.constant 0 : index
    %44 = vector.load %arg4[%c0_13, %c0_14] : memref<1x16xf32, #tpu.memory_space<vmem>>, vector<1x16xf32>
    %45 = vector.broadcast %44 : vector<1x16xf32> to vector<8x16xf32>
    %46 = arith.addf %20, %45 : vector<8x16xf32>
    %cst_15 = arith.constant 0.000000e+00 : f32
    %47 = vector.broadcast %cst_15 : f32 to vector<8x16xf32>
    %48 = arith.cmpf ogt, %46, %47 : vector<8x16xf32>
    %49 = math.exp %46 : vector<8x16xf32>
    %cst_16 = arith.constant 1.000000e+00 : f32
    %50 = vector.broadcast %cst_16 : f32 to vector<8x16xf32>
    %51 = arith.subf %49, %50 : vector<8x16xf32>
    %cst_17 = arith.constant 1.67326319 : f32
    %52 = vector.broadcast %cst_17 : f32 to vector<8x16xf32>
    %53 = arith.mulf %52, %51 : vector<8x16xf32>
    %54 = arith.select %48, %46, %53 : vector<8x16xi1>, vector<8x16xf32>
    %cst_18 = arith.constant 1.05070102 : f32
    %55 = vector.broadcast %cst_18 : f32 to vector<8x16xf32>
    %56 = arith.mulf %55, %54 : vector<8x16xf32>
    %c0_19 = arith.constant 0 : index
    %c0_20 = arith.constant 0 : index
    %57 = vector.load %arg5[%c0_19, %c0_20] : memref<1x16xf32, #tpu.memory_space<vmem>>, vector<1x16xf32>
    %58 = vector.broadcast %57 : vector<1x16xf32> to vector<8x16xf32>
    %59 = arith.addf %30, %58 : vector<8x16xf32>
    %cst_21 = arith.constant 0.000000e+00 : f32
    %60 = vector.broadcast %cst_21 : f32 to vector<8x16xf32>
    %61 = arith.cmpf ogt, %59, %60 : vector<8x16xf32>
    %62 = math.exp %59 : vector<8x16xf32>
    %cst_22 = arith.constant 1.000000e+00 : f32
    %63 = vector.broadcast %cst_22 : f32 to vector<8x16xf32>
    %64 = arith.subf %62, %63 : vector<8x16xf32>
    %cst_23 = arith.constant 1.67326319 : f32
    %65 = vector.broadcast %cst_23 : f32 to vector<8x16xf32>
    %66 = arith.mulf %65, %64 : vector<8x16xf32>
    %67 = arith.select %61, %59, %66 : vector<8x16xi1>, vector<8x16xf32>
    %cst_24 = arith.constant 1.05070102 : f32
    %68 = vector.broadcast %cst_24 : f32 to vector<8x16xf32>
    %69 = arith.mulf %68, %67 : vector<8x16xf32>
    %c0_25 = arith.constant 0 : index
    %c0_26 = arith.constant 0 : index
    %70 = vector.load %arg6[%c0_25, %c0_26] : memref<16x4xf32, #tpu.memory_space<vmem>>, vector<16x4xf32>
    %cst_27 = arith.constant dense<0.000000e+00> : vector<8x4xf32>
    %71 = tpu.matmul %43, %70, %cst_27 {dimension_numbers = #tpu.dot_dimension_numbers<[1], [0], [0], [1], [0, 0, 1, 1], [], []>} : vector<8x16xf32>, vector<16x4xf32>, vector<8x4xf32> -> vector<8x4xf32>
    %c0_28 = arith.constant 0 : index
    %c0_29 = arith.constant 0 : index
    %72 = vector.load %arg7[%c0_28, %c0_29] : memref<16x4xf32, #tpu.memory_space<vmem>>, vector<16x4xf32>
    %cst_30 = arith.constant dense<0.000000e+00> : vector<8x4xf32>
    %73 = tpu.matmul %56, %72, %cst_30 {dimension_numbers = #tpu.dot_dimension_numbers<[1], [0], [0], [1], [0, 0, 1, 1], [], []>} : vector<8x16xf32>, vector<16x4xf32>, vector<8x4xf32> -> vector<8x4xf32>
    %74 = arith.addf %71, %73 : vector<8x4xf32>
    %c0_31 = arith.constant 0 : index
    %c0_32 = arith.constant 0 : index
    %75 = vector.load %arg8[%c0_31, %c0_32] : memref<16x4xf32, #tpu.memory_space<vmem>>, vector<16x4xf32>
    %cst_33 = arith.constant dense<0.000000e+00> : vector<8x4xf32>
    %76 = tpu.matmul %69, %75, %cst_33 {dimension_numbers = #tpu.dot_dimension_numbers<[1], [0], [0], [1], [0, 0, 1, 1], [], []>} : vector<8x16xf32>, vector<16x4xf32>, vector<8x4xf32> -> vector<8x4xf32>
    %77 = arith.addf %74, %76 : vector<8x4xf32>
    %c0_34 = arith.constant 0 : index
    %c0_35 = arith.constant 0 : index
    %78 = vector.load %arg9[%c0_34, %c0_35] : memref<1x4xf32, #tpu.memory_space<vmem>>, vector<1x4xf32>
    %79 = vector.broadcast %78 : vector<1x4xf32> to vector<8x4xf32>
    %80 = arith.addf %77, %79 : vector<8x4xf32>
    %c0_36 = arith.constant 0 : index
    %c0_37 = arith.constant 0 : index
    %81 = vector.load %arg10[%c0_36, %c0_37] : memref<8x4xf32, #tpu.memory_space<vmem>>, vector<8x4xf32>
    tpu.vector_store %arg10[%c0_36, %c0_37], %80 {strides = array<i32>} : memref<8x4xf32, #tpu.memory_space<vmem>>, vector<8x4xf32>,
    return
  }
  func.func @transform_0(%arg0: i32) -> (i32, i32, i32) {
    %c0_i32 = arith.constant 0 : i32
    %c0_i32_0 = arith.constant 0 : i32
    %c0_i32_1 = arith.constant 0 : i32
    return %arg0, %c0_i32, %c0_i32_0 : i32, i32, i32
  }
  func.func @transform_1(%arg0: i32) -> (i32, i32) {
    %c0_i32 = arith.constant 0 : i32
    %c0_i32_0 = arith.constant 0 : i32
    %c0_i32_1 = arith.constant 0 : i32
    return %c0_i32, %c0_i32_0 : i32, i32
  }
  func.func @transform_2(%arg0: i32) -> (i32, i32) {
    %c0_i32 = arith.constant 0 : i32
    %c0_i32_0 = arith.constant 0 : i32
    %c0_i32_1 = arith.constant 0 : i32
    return %c0_i32, %c0_i32_0 : i32, i32
  }
  func.func @transform_3(%arg0: i32) -> (i32, i32) {
    %c0_i32 = arith.constant 0 : i32
    %c0_i32_0 = arith.constant 0 : i32
    %c0_i32_1 = arith.constant 0 : i32
    return %c0_i32, %c0_i32_0 : i32, i32
  }
  func.func @transform_4(%arg0: i32) -> (i32, i32) {
    %c0_i32 = arith.constant 0 : i32
    %c0_i32_0 = arith.constant 0 : i32
    %c0_i32_1 = arith.constant 0 : i32
    return %c0_i32, %c0_i32_0 : i32, i32
  }
  func.func @transform_5(%arg0: i32) -> (i32, i32) {
    %c0_i32 = arith.constant 0 : i32
    %c0_i32_0 = arith.constant 0 : i32
    %c0_i32_1 = arith.constant 0 : i32
    return %c0_i32, %c0_i32_0 : i32, i32
  }
  func.func @transform_6(%arg0: i32) -> (i32, i32) {
    %c0_i32 = arith.constant 0 : i32
    %c0_i32_0 = arith.constant 0 : i32
    %c0_i32_1 = arith.constant 0 : i32
    return %c0_i32, %c0_i32_0 : i32, i32
  }
  func.func @transform_7(%arg0: i32) -> (i32, i32) {
    %c0_i32 = arith.constant 0 : i32
    %c0_i32_0 = arith.constant 0 : i32
    %c0_i32_1 = arith.constant 0 : i32
    return %c0_i32, %c0_i32_0 : i32, i32
  }
  func.func @transform_8(%arg0: i32) -> (i32, i32) {
    %c0_i32 = arith.constant 0 : i32
    %c0_i32_0 = arith.constant 0 : i32
    %c0_i32_1 = arith.constant 0 : i32
    return %c0_i32, %c0_i32_0 : i32, i32
  }
  func.func @transform_9(%arg0: i32) -> (i32, i32) {
    %c0_i32 = arith.constant 0 : i32
    %c0_i32_0 = arith.constant 0 : i32
    return %arg0, %c0_i32 : i32, i32
  }
}

</mosaic_0001>

<llo_original>
// kernel: tpu_custom_call.1
$region0: #{tpu_custom_call.1}
  #allocation0 [shape = 'u32[]', space=smem, size = 0x4, offset = 0x4, fixed_abs, tag = 'smem constant byte address 0x4 - core index']
  #allocation1 [shape = 'u32[144,128]{1,0:T(1,128)}', space=vmem, size = 0x12000, scoped, tag = 'internal scratch']
  %s0 = inlined_call_operand.vmem [shape: f32[8,32,16], index: 0, kind: input, shape index: {}]
  %s1 = inlined_call_operand.vmem [shape: bf16[32,192], index: 1, kind: input, shape index: {}]
  %s2 = inlined_call_operand.vmem [shape: f32[1,16], index: 2, kind: input, shape index: {}]
  %s3 = inlined_call_operand.vmem [shape: f32[1,16], index: 3, kind: input, shape index: {}]
  %s4 = inlined_call_operand.vmem [shape: f32[1,16], index: 4, kind: input, shape index: {}]
  %s5 = inlined_call_operand.vmem [shape: f32[16,4], index: 5, kind: input, shape index: {}]
  %s6 = inlined_call_operand.vmem [shape: f32[16,4], index: 6, kind: input, shape index: {}]
  %s7 = inlined_call_operand.vmem [shape: f32[16,4], index: 7, kind: input, shape index: {}]
  %s8 = inlined_call_operand.vmem [shape: f32[1,4], index: 8, kind: input, shape index: {}]
  %s9 = inlined_call_operand.vmem [shape: f32[8,4], index: 9, kind: output, shape index: {}]
  %s10 = sld [smem:[#allocation0]]
  $region46: #{tpu_custom_call.1} parent=0
    _
  %s12 = ssub.s32 1, %s10
  %s13 = scalar_select 0, %s12, %s10
  // Predicated region
  $region2: #{tpu_custom_call.1} parent=0 // pred_check
    _
  $region3: #{tpu_custom_call.1} parent=0 // pred_check_branch
    %15 = sbr.rel (0) target = $region5
  $region4: #{tpu_custom_call.1} parent=0 // pred_region
    _
  $region5: #{tpu_custom_call.1} parent=0 // pred_fallthru
    _
  // Predicated region
  $region6: #{tpu_custom_call.1} parent=0 // pred_check
    _
  $region7: #{tpu_custom_call.1} parent=0 // pred_check_branch
    %17 = sbr.rel (0) target = $region9
  $region8: #{tpu_custom_call.1} parent=0 // pred_region
    _
  $region9: #{tpu_custom_call.1} parent=0 // pred_fallthru
    _
  // Predicated region
  $region10: #{tpu_custom_call.1} parent=0 // pred_check
    _
  $region11: #{tpu_custom_call.1} parent=0 // pred_check_branch
    %19 = sbr.rel (0) target = $region13
  $region12: #{tpu_custom_call.1} parent=0 // pred_region
    _
  $region13: #{tpu_custom_call.1} parent=0 // pred_fallthru
    _
  // Predicated region
  $region14: #{tpu_custom_call.1} parent=0 // pred_check
    _
  $region15: #{tpu_custom_call.1} parent=0 // pred_check_branch
    %21 = sbr.rel (0) target = $region17
  $region16: #{tpu_custom_call.1} parent=0 // pred_region
    _
  $region17: #{tpu_custom_call.1} parent=0 // pred_fallthru
    _
  // Predicated region
  $region18: #{tpu_custom_call.1} parent=0 // pred_check
    _
  $region19: #{tpu_custom_call.1} parent=0 // pred_check_branch
    %23 = sbr.rel (0) target = $region21
  $region20: #{tpu_custom_call.1} parent=0 // pred_region
    _
  $region21: #{tpu_custom_call.1} parent=0 // pred_fallthru
    _
  // Predicated region
  $region22: #{tpu_custom_call.1} parent=0 // pred_check
    _
  $region23: #{tpu_custom_call.1} parent=0 // pred_check_branch
    %25 = sbr.rel (0) target = $region25
  $region24: #{tpu_custom_call.1} parent=0 // pred_region
    _
  $region25: #{tpu_custom_call.1} parent=0 // pred_fallthru
    _
  // Predicated region
  $region26: #{tpu_custom_call.1} parent=0 // pred_check
    _
  $region27: #{tpu_custom_call.1} parent=0 // pred_check_branch
    %27 = sbr.rel (0) target = $region29
  $region28: #{tpu_custom_call.1} parent=0 // pred_region
    _
  $region29: #{tpu_custom_call.1} parent=0 // pred_fallthru
    _
  // Predicated region
  $region30: #{tpu_custom_call.1} parent=0 // pred_check
    _
  $region31: #{tpu_custom_call.1} parent=0 // pred_check_branch
    %29 = sbr.rel (0) target = $region33
  $region32: #{tpu_custom_call.1} parent=0 // pred_region
    _
  $region33: #{tpu_custom_call.1} parent=0 // pred_fallthru
    _
  // Predicated region
  $region34: #{tpu_custom_call.1} parent=0 // pred_check
    _
  $region35: #{tpu_custom_call.1} parent=0 // pred_check_branch
    %31 = sbr.rel (0) target = $region37
  $region36: #{tpu_custom_call.1} parent=0 // pred_region
    _
  $region37: #{tpu_custom_call.1} parent=0 // pred_fallthru
    _
  %v33 = vld [vmem:[%s0] sm:$0xff]
  %v34 = vld [vmem:[%s0 + $0x8] sm:$0xff]
  %v35 = vld [vmem:[%s0 + $0x10] sm:$0xff]
  %v36 = vld [vmem:[%s0 + $0x18] sm:$0xff]
  %v37 = vld [vmem:[%s0 + $0x20] sm:$0xff]
  %v38 = vld [vmem:[%s0 + $0x28] sm:$0xff]
  %v39 = vld [vmem:[%s0 + $0x30] sm:$0xff]
  %v40 = vld [vmem:[%s0 + $0x38] sm:$0xff]
  %v41 = vld [vmem:[%s0 + $0x40] sm:$0xff]
  %v42 = vld [vmem:[%s0 + $0x48] sm:$0xff]
  %v43 = vld [vmem:[%s0 + $0x50] sm:$0xff]
  %v44 = vld [vmem:[%s0 + $0x58] sm:$0xff]
  %v45 = vld [vmem:[%s0 + $0x60] sm:$0xff]
  %v46 = vld [vmem:[%s0 + $0x68] sm:$0xff]
  %v47 = vld [vmem:[%s0 + $0x70] sm:$0xff]
  %v48 = vld [vmem:[%s0 + $0x78] sm:$0xff]
  %v49 = vld [vmem:[%s0 + $0x80] sm:$0xff]
  %v50 = vld [vmem:[%s0 + $0x88] sm:$0xff]
  %v51 = vld [vmem:[%s0 + $0x90] sm:$0xff]
  %v52 = vld [vmem:[%s0 + $0x98] sm:$0xff]
  %v53 = vld [vmem:[%s0 + $0xa0] sm:$0xff]
  %v54 = vld [vmem:[%s0 + $0xa8] sm:$0xff]
  %v55 = vld [vmem:[%s0 + $0xb0] sm:$0xff]
  %v56 = vld [vmem:[%s0 + $0xb8] sm:$0xff]
  %v57 = vld [vmem:[%s0 + $0xc0] sm:$0xff]
  %v58 = vld [vmem:[%s0 + $0xc8] sm:$0xff]
  %v59 = vld [vmem:[%s0 + $0xd0] sm:$0xff]
  %v60 = vld [vmem:[%s0 + $0xd8] sm:$0xff]
  %v61 = vld [vmem:[%s0 + $0xe0] sm:$0xff]
  %v62 = vld [vmem:[%s0 + $0xe8] sm:$0xff]
  %v63 = vld [vmem:[%s0 + $0xf0] sm:$0xff]
  %v64 = vld [vmem:[%s0 + $0xf8] sm:$0xff]
  %65 = vxpose.xlu0.b32.start [1/16] %v33, 128
  %66 = vxpose.xlu0.b32.cont [2/16] %v34, 128
  %67 = vxpose.xlu0.b32.cont [3/16] %v35, 128
  %68 = vxpose.xlu0.b32.cont [4/16] %v36, 128
  %69 = vxpose.xlu0.b32.cont [5/16] 0.0, 128
  %70 = vxpose.xlu0.b32.cont [6/16] 0.0, 128
  %71 = vxpose.xlu0.b32.cont [7/16] 0.0, 128
  %72 = vxpose.xlu0.b32.cont [8/16] 0.0, 128
  %73 = vxpose.xlu0.b32.cont [9/16] 0.0, 128
  %74 = vxpose.xlu0.b32.cont [10/16] 0.0, 128
  %75 = vxpose.xlu0.b32.cont [11/16] 0.0, 128
  %76 = vxpose.xlu0.b32.cont [12/16] 0.0, 128
  %77 = vxpose.xlu0.b32.cont [13/16] 0.0, 128
  %78 = vxpose.xlu0.b32.cont [14/16] 0.0, 128
  %79 = vxpose.xlu0.b32.cont [15/16] 0.0, 128
  %80 = vxpose.xlu0.b32.end [16/16] 0.0, 128
  %v81 = vpop.trf.xlu0
  %v82 = vpop.trf.xlu0
  %v83 = vpop.trf.xlu0
  %v84 = vpop.trf.xlu0
  %v85 = vpop.trf.xlu0
  %v86 = vpop.trf.xlu0
  %v87 = vpop.trf.xlu0
  %v88 = vpop.trf.xlu0
  %v89 = vpop.trf.xlu0
  %v90 = vpop.trf.xlu0
  %v91 = vpop.trf.xlu0
  %v92 = vpop.trf.xlu0
  %v93 = vpop.trf.xlu0
  %v94 = vpop.trf.xlu0
  %v95 = vpop.trf.xlu0
  %v96 = vpop.trf.xlu0
  %97 = vxpose.xlu0.b32.start [1/16] %v37, 128
  %98 = vxpose.xlu0.b32.cont [2/16] %v38, 128
  %99 = vxpose.xlu0.b32.cont [3/16] %v39, 128
  %100 = vxpose.xlu0.b32.cont [4/16] %v40, 128
  %101 = vxpose.xlu0.b32.cont [5/16] 0.0, 128
  %102 = vxpose.xlu0.b32.cont [6/16] 0.0, 128
  %103 = vxpose.xlu0.b32.cont [7/16] 0.0, 128
  %104 = vxpose.xlu0.b32.cont [8/16] 0.0, 128
  %105 = vxpose.xlu0.b32.cont [9/16] 0.0, 128
  %106 = vxpose.xlu0.b32.cont [10/16] 0.0, 128
  %107 = vxpose.xlu0.b32.cont [11/16] 0.0, 128
  %108 = vxpose.xlu0.b32.cont [12/16] 0.0, 128
  %109 = vxpose.xlu0.b32.cont [13/16] 0.0, 128
  %110 = vxpose.xlu0.b32.cont [14/16] 0.0, 128
  %111 = vxpose.xlu0.b32.cont [15/16] 0.0, 128
  %112 = vxpose.xlu0.b32.end [16/16] 0.0, 128
  %v113 = vpop.trf.xlu0
  %v114 = vpop.trf.xlu0
  %v115 = vpop.trf.xlu0
  %v116 = vpop.trf.xlu0
  %v117 = vpop.trf.xlu0
  %v118 = vpop.trf.xlu0
  %v119 = vpop.trf.xlu0
  %v120 = vpop.trf.xlu0
  %v121 = vpop.trf.xlu0
  %v122 = vpop.trf.xlu0
  %v123 = vpop.trf.xlu0
  %v124 = vpop.trf.xlu0
  %v125 = vpop.trf.xlu0
  %v126 = vpop.trf.xlu0
  %v127 = vpop.trf.xlu0
  %v128 = vpop.trf.xlu0
  %129 = vxpose.xlu0.b32.start [1/16] %v41, 128
  %130 = vxpose.xlu0.b32.cont [2/16] %v42, 128
  %131 = vxpose.xlu0.b32.cont [3/16] %v43, 128
  %132 = vxpose.xlu0.b32.cont [4/16] %v44, 128
  %133 = vxpose.xlu0.b32.cont [5/16] 0.0, 128
  %134 = vxpose.xlu0.b32.cont [6/16] 0.0, 128
  %135 = vxpose.xlu0.b32.cont [7/16] 0.0, 128
  %136 = vxpose.xlu0.b32.cont [8/16] 0.0, 128
  %137 = vxpose.xlu0.b32.cont [9/16] 0.0, 128
  %138 = vxpose.xlu0.b32.cont [10/16] 0.0, 128
  %139 = vxpose.xlu0.b32.cont [11/16] 0.0, 128
  %140 = vxpose.xlu0.b32.cont [12/16] 0.0, 128
  %141 = vxpose.xlu0.b32.cont [13/16] 0.0, 128
  %142 = vxpose.xlu0.b32.cont [14/16] 0.0, 128
  %143 = vxpose.xlu0.b32.cont [15/16] 0.0, 128
  %144 = vxpose.xlu0.b32.end [16/16] 0.0, 128
  %v145 = vpop.trf.xlu0
  %v146 = vpop.trf.xlu0
  %v147 = vpop.trf.xlu0
  %v148 = vpop.trf.xlu0
  %v149 = vpop.trf.xlu0
  %v150 = vpop.trf.xlu0
  %v151 = vpop.trf.xlu0
  %v152 = vpop.trf.xlu0
  %v153 = vpop.trf.xlu0
  %v154 = vpop.trf.xlu0
  %v155 = vpop.trf.xlu0
  %v156 = vpop.trf.xlu0
  %v157 = vpop.trf.xlu0
  %v158 = vpop.trf.xlu0
  %v159 = vpop.trf.xlu0
  %v160 = vpop.trf.xlu0
  %161 = vxpose.xlu0.b32.start [1/16] %v45, 128
  %162 = vxpose.xlu0.b32.cont [2/16] %v46, 128
  %163 = vxpose.xlu0.b32.cont [3/16] %v47, 128
  %164 = vxpose.xlu0.b32.cont [4/16] %v48, 128
  %165 = vxpose.xlu0.b32.cont [5/16] 0.0, 128
  %166 = vxpose.xlu0.b32.cont [6/16] 0.0, 128
  %167 = vxpose.xlu0.b32.cont [7/16] 0.0, 128
  %168 = vxpose.xlu0.b32.cont [8/16] 0.0, 128
  %169 = vxpose.xlu0.b32.cont [9/16] 0.0, 128
  %170 = vxpose.xlu0.b32.cont [10/16] 0.0, 128
  %171 = vxpose.xlu0.b32.cont [11/16] 0.0, 128
  %172 = vxpose.xlu0.b32.cont [12/16] 0.0, 128
  %173 = vxpose.xlu0.b32.cont [13/16] 0.0, 128
  %174 = vxpose.xlu0.b32.cont [14/16] 0.0, 128
  %175 = vxpose.xlu0.b32.cont [15/16] 0.0, 128
  %176 = vxpose.xlu0.b32.end [16/16] 0.0, 128
  %v177 = vpop.trf.xlu0
  %v178 = vpop.trf.xlu0
  %v179 = vpop.trf.xlu0
  %v180 = vpop.trf.xlu0
  %v181 = vpop.trf.xlu0
  %v182 = vpop.trf.xlu0
  %v183 = vpop.trf.xlu0
  %v184 = vpop.trf.xlu0
  %v185 = vpop.trf.xlu0
  %v186 = vpop.trf.xlu0
  %v187 = vpop.trf.xlu0
  %v188 = vpop.trf.xlu0
  %v189 = vpop.trf.xlu0
  %v190 = vpop.trf.xlu0
  %v191 = vpop.trf.xlu0
  %v192 = vpop.trf.xlu0
  %193 = vxpose.xlu0.b32.start [1/16] %v49, 128
  %194 = vxpose.xlu0.b32.cont [2/16] %v50, 128
  %195 = vxpose.xlu0.b32.cont [3/16] %v51, 128
  %196 = vxpose.xlu0.b32.cont [4/16] %v52, 128
  %197 = vxpose.xlu0.b32.cont [5/16] 0.0, 128
  %198 = vxpose.xlu0.b32.cont [6/16] 0.0, 128
  %199 = vxpose.xlu0.b32.cont [7/16] 0.0, 128
  %200 = vxpose.xlu0.b32.cont [8/16] 0.0, 128
  %201 = vxpose.xlu0.b32.cont [9/16] 0.0, 128
  %202 = vxpose.xlu0.b32.cont [10/16] 0.0, 128
  %203 = vxpose.xlu0.b32.cont [11/16] 0.0, 128
  %204 = vxpose.xlu0.b32.cont [12/16] 0.0, 128
  %205 = vxpose.xlu0.b32.cont [13/16] 0.0, 128
  %206 = vxpose.xlu0.b32.cont [14/16] 0.0, 128
  %207 = vxpose.xlu0.b32.cont [15/16] 0.0, 128
  %208 = vxpose.xlu0.b32.end [16/16] 0.0, 128
  %v209 = vpop.trf.xlu0
  %v210 = vpop.trf.xlu0
  %v211 = vpop.trf.xlu0
  %v212 = vpop.trf.xlu0
  %v213 = vpop.trf.xlu0
  %v214 = vpop.trf.xlu0
  %v215 = vpop.trf.xlu0
  %v216 = vpop.trf.xlu0
  %v217 = vpop.trf.xlu0
  %v218 = vpop.trf.xlu0
  %v219 = vpop.trf.xlu0
  %v220 = vpop.trf.xlu0
  %v221 = vpop.trf.xlu0
  %v222 = vpop.trf.xlu0
  %v223 = vpop.trf.xlu0
  %v224 = vpop.trf.xlu0
  %225 = vxpose.xlu0.b32.start [1/16] %v53, 128
  %226 = vxpose.xlu0.b32.cont [2/16] %v54, 128
  %227 = vxpose.xlu0.b32.cont [3/16] %v55, 128
  %228 = vxpose.xlu0.b32.cont [4/16] %v56, 128
  %229 = vxpose.xlu0.b32.cont [5/16] 0.0, 128
  %230 = vxpose.xlu0.b32.cont [6/16] 0.0, 128
  %231 = vxpose.xlu0.b32.cont [7/16] 0.0, 128
  %232 = vxpose.xlu0.b32.cont [8/16] 0.0, 128
  %233 = vxpose.xlu0.b32.cont [9/16] 0.0, 128
  %234 = vxpose.xlu0.b32.cont [10/16] 0.0, 128
  %235 = vxpose.xlu0.b32.cont [11/16] 0.0, 128
  %236 = vxpose.xlu0.b32.cont [12/16] 0.0, 128
  %237 = vxpose.xlu0.b32.cont [13/16] 0.0, 128
  %238 = vxpose.xlu0.b32.cont [14/16] 0.0, 128
  %239 = vxpose.xlu0.b32.cont [15/16] 0.0, 128
  %240 = vxpose.xlu0.b32.end [16/16] 0.0, 128
  %v241 = vpop.trf.xlu0
  %v242 = vpop.trf.xlu0
  %v243 = vpop.trf.xlu0
  %v244 = vpop.trf.xlu0
  %v245 = vpop.trf.xlu0
  %v246 = vpop.trf.xlu0
  %v247 = vpop.trf.xlu0
  %v248 = vpop.trf.xlu0
  %v249 = vpop.trf.xlu0
  %v250 = vpop.trf.xlu0
  %v251 = vpop.trf.xlu0
  %v252 = vpop.trf.xlu0
  %v253 = vpop.trf.xlu0
  %v254 = vpop.trf.xlu0
  %v255 = vpop.trf.xlu0
  %v256 = vpop.trf.xlu0
  %257 = vxpose.xlu0.b32.start [1/16] %v57, 128
  %258 = vxpose.xlu0.b32.cont [2/16] %v58, 128
  %259 = vxpose.xlu0.b32.cont [3/16] %v59, 128
  %260 = vxpose.xlu0.b32.cont [4/16] %v60, 128
  %261 = vxpose.xlu0.b32.cont [5/16] 0.0, 128
  %262 = vxpose.xlu0.b32.cont [6/16] 0.0, 128
  %263 = vxpose.xlu0.b32.cont [7/16] 0.0, 128
  %264 = vxpose.xlu0.b32.cont [8/16] 0.0, 128
  %265 = vxpose.xlu0.b32.cont [9/16] 0.0, 128
  %266 = vxpose.xlu0.b32.cont [10/16] 0.0, 128
  %267 = vxpose.xlu0.b32.cont [11/16] 0.0, 128
  %268 = vxpose.xlu0.b32.cont [12/16] 0.0, 128
  %269 = vxpose.xlu0.b32.cont [13/16] 0.0, 128
  %270 = vxpose.xlu0.b32.cont [14/16] 0.0, 128
  %271 = vxpose.xlu0.b32.cont [15/16] 0.0, 128
  %272 = vxpose.xlu0.b32.end [16/16] 0.0, 128
  %v273 = vpop.trf.xlu0
  %v274 = vpop.trf.xlu0
  %v275 = vpop.trf.xlu0
  %v276 = vpop.trf.xlu0
  %v277 = vpop.trf.xlu0
  %v278 = vpop.trf.xlu0
  %v279 = vpop.trf.xlu0
  %v280 = vpop.trf.xlu0
  %v281 = vpop.trf.xlu0
  %v282 = vpop.trf.xlu0
  %v283 = vpop.trf.xlu0
  %v284 = vpop.trf.xlu0
  %v285 = vpop.trf.xlu0
  %v286 = vpop.trf.xlu0
  %v287 = vpop.trf.xlu0
  %v288 = vpop.trf.xlu0
  %289 = vxpose.xlu0.b32.start [1/16] %v61, 128
  %290 = vxpose.xlu0.b32.cont [2/16] %v62, 128
  %291 = vxpose.xlu0.b32.cont [3/16] %v63, 128
  %292 = vxpose.xlu0.b32.cont [4/16] %v64, 128
  %293 = vxpose.xlu0.b32.cont [5/16] 0.0, 128
  %294 = vxpose.xlu0.b32.cont [6/16] 0.0, 128
  %295 = vxpose.xlu0.b32.cont [7/16] 0.0, 128
  %296 = vxpose.xlu0.b32.cont [8/16] 0.0, 128
  %297 = vxpose.xlu0.b32.cont [9/16] 0.0, 128
  %298 = vxpose.xlu0.b32.cont [10/16] 0.0, 128
  %299 = vxpose.xlu0.b32.cont [11/16] 0.0, 128
  %300 = vxpose.xlu0.b32.cont [12/16] 0.0, 128
  %301 = vxpose.xlu0.b32.cont [13/16] 0.0, 128
  %302 = vxpose.xlu0.b32.cont [14/16] 0.0, 128
  %303 = vxpose.xlu0.b32.cont [15/16] 0.0, 128
  %304 = vxpose.xlu0.b32.end [16/16] 0.0, 128
  %v305 = vpop.trf.xlu0
  %v306 = vpop.trf.xlu0
  %v307 = vpop.trf.xlu0
  %v308 = vpop.trf.xlu0
  %v309 = vpop.trf.xlu0
  %v310 = vpop.trf.xlu0
  %v311 = vpop.trf.xlu0
  %v312 = vpop.trf.xlu0
  %v313 = vpop.trf.xlu0
  %v314 = vpop.trf.xlu0
  %v315 = vpop.trf.xlu0
  %v316 = vpop.trf.xlu0
  %v317 = vpop.trf.xlu0
  %v318 = vpop.trf.xlu0
  %v319 = vpop.trf.xlu0
  %v320 = vpop.trf.xlu0
  %v321 = vpack.c.bf16 %v82, %v81
  %v322 = vpack.c.bf16 %v114, %v113
  %v323 = vpack.c.bf16 %v146, %v145
  %v324 = vpack.c.bf16 %v178, %v177
  %v325 = vpack.c.bf16 %v210, %v209
  %v326 = vpack.c.bf16 %v242, %v241
  %v327 = vpack.c.bf16 %v274, %v273
  %v328 = vpack.c.bf16 %v306, %v305
  %v329 = vld [vmem:[%s1] sm:$0xff]
  %v330 = vld [vmem:[%s1 + $0x8] sm:$0xff]
  %v331 = vld [vmem:[%s1 + $0x10] sm:$0xff]
  %v332 = vld [vmem:[%s1 + $0x18] sm:$0xff]
  %v337 = vunpack.c.l.b16 %v329
  %v338 = vunpack.c.h.b16 %v329
  %v339 = vunpack.c.l.b16 %v330
  %v340 = vunpack.c.h.b16 %v330
  %v341 = vunpack.c.l.b16 %v331
  %v342 = vunpack.c.h.b16 %v331
  %v343 = vunpack.c.l.b16 %v332
  %v344 = vunpack.c.h.b16 %v332
  %v345 = vpack.c.b16 %v339, %v337
  %v346 = vpack.c.b16 %v340, %v338
  %v347 = vpack.c.b16 %v343, %v341
  %v348 = vpack.c.b16 %v344, %v342
  %vm353 = vcmask 261120
  %v355 = vsel %vm353, %v321, 0
  %v358 = vsel %vm353, %v322, 0
  %v361 = vsel %vm353, %v323, 0
  %v364 = vsel %vm353, %v324, 0
  %v367 = vsel %vm353, %v325, 0
  %v370 = vsel %vm353, %v326, 0
  %v373 = vsel %vm353, %v327, 0
  %v376 = vsel %vm353, %v328, 0
  %378 = vmatprep.subr.bf16.mxu0 %v346
  %379 = vmatpush1.bf16.msra.mxu0 %v345
  %380 = vmatprep.subr.bf16.mxu0 %v348
  %381 = vmatpush1.bf16.msra.mxu0 %v347
  %382 = vmatprep.subr.bf16.mxu0 0
  %383 = vmatpush1.bf16.msra.mxu0 0
  %384 = vmatprep.subr.bf16.mxu0 0
  %385 = vmatpush1.bf16.msra.mxu0 0
  %386 = vmatprep.subr.bf16.mxu0 0
  %387 = vmatpush1.bf16.msra.mxu0 0
  %388 = vmatprep.subr.bf16.mxu0 0
  %389 = vmatpush1.bf16.msra.mxu0 0
  %390 = vmatprep.subr.bf16.mxu0 0
  %391 = vmatpush1.bf16.msra.mxu0 0
  %392 = vmatprep.subr.bf16.mxu0 0
  %393 = vmatpush1.bf16.msra.mxu0 0
  %394 = vmatprep.subr.bf16.mxu0 0
  %395 = vmatpush1.bf16.msra.mxu0 0
  %396 = vmatprep.subr.bf16.mxu0 0
  %397 = vmatpush1.bf16.msra.mxu0 0
  %398 = vmatprep.subr.bf16.mxu0 0
  %399 = vmatpush1.bf16.msra.mxu0 0
  %400 = vmatprep.subr.bf16.mxu0 0
  %401 = vmatpush1.bf16.msra.mxu0 0
  %402 = vmatprep.subr.bf16.mxu0 0
  %403 = vmatpush1.bf16.msra.mxu0 0
  %404 = vmatprep.subr.bf16.mxu0 0
  %405 = vmatpush1.bf16.msra.mxu0 0
  %406 = vmatprep.subr.bf16.mxu0 0
  %407 = vmatpush1.bf16.msra.mxu0 0
  %408 = vmatprep.subr.bf16.mxu0 0
  %409 = vmatpush1.bf16.msra.mxu0 0
  %410 = vmatprep.mubr.bf16.mxu0 0
  %411 = vmatmul.mubr.bf16.gmra.mrb[0].mxu0 %v355
  %v412 = vpop.f32.mrb[0].mxu0
  %v413 = vadd.f32 0.0, %v412
  %v414 = vpop.f32.mrb[0].mxu0
  %v415 = vadd.f32 0.0, %v414
  %v416 = vpop.f32.mrb[0].mxu0
  %v417 = vadd.f32 0.0, %v416
  %v418 = vpop.f32.mrb[0].mxu0
  %v419 = vadd.f32 0.0, %v418
  %420 = vmatprep.mubr.bf16.mxu0 0
  %421 = vmatmul.mubr.bf16.gmra.mrb[0].mxu0 %v358
  %v422 = vpop.f32.mrb[0].mxu0
  %v423 = vadd.f32 0.0, %v422
  %v424 = vpop.f32.mrb[0].mxu0
  %v425 = vadd.f32 0.0, %v424
  %v426 = vpop.f32.mrb[0].mxu0
  %v427 = vadd.f32 0.0, %v426
  %v428 = vpop.f32.mrb[0].mxu0
  %v429 = vadd.f32 0.0, %v428
  %430 = vmatprep.mubr.bf16.mxu0 0
  %431 = vmatmul.mubr.bf16.gmra.mrb[0].mxu0 %v361
  %v432 = vpop.f32.mrb[0].mxu0
  %v433 = vadd.f32 0.0, %v432
  %v434 = vpop.f32.mrb[0].mxu0
  %v435 = vadd.f32 0.0, %v434
  %v436 = vpop.f32.mrb[0].mxu0
  %v437 = vadd.f32 0.0, %v436
  %v438 = vpop.f32.mrb[0].mxu0
  %v439 = vadd.f32 0.0, %v438
  %440 = vmatprep.mubr.bf16.mxu0 0
  %441 = vmatmul.mubr.bf16.gmra.mrb[0].mxu0 %v364
  %v442 = vpop.f32.mrb[0].mxu0
  %v443 = vadd.f32 0.0, %v442
  %v444 = vpop.f32.mrb[0].mxu0
  %v445 = vadd.f32 0.0, %v444
  %v446 = vpop.f32.mrb[0].mxu0
  %v447 = vadd.f32 0.0, %v446
  %v448 = vpop.f32.mrb[0].mxu0
  %v449 = vadd.f32 0.0, %v448
  %450 = vmatprep.mubr.bf16.mxu0 0
  %451 = vmatmul.mubr.bf16.gmra.mrb[0].mxu0 %v367
  %v452 = vpop.f32.mrb[0].mxu0
  %v453 = vadd.f32 0.0, %v452
  %v454 = vpop.f32.mrb[0].mxu0
  %v455 = vadd.f32 0.0, %v454
  %v456 = vpop.f32.mrb[0].mxu0
  %v457 = vadd.f32 0.0, %v456
  %v458 = vpop.f32.mrb[0].mxu0
  %v459 = vadd.f32 0.0, %v458
  %460 = vmatprep.mubr.bf16.mxu0 0
  %461 = vmatmul.mubr.bf16.gmra.mrb[0].mxu0 %v370
  %v462 = vpop.f32.mrb[0].mxu0
  %v463 = vadd.f32 0.0, %v462
  %v464 = vpop.f32.mrb[0].mxu0
  %v465 = vadd.f32 0.0, %v464
  %v466 = vpop.f32.mrb[0].mxu0
  %v467 = vadd.f32 0.0, %v466
  %v468 = vpop.f32.mrb[0].mxu0
  %v469 = vadd.f32 0.0, %v468
  %470 = vmatprep.mubr.bf16.mxu0 0
  %471 = vmatmul.mubr.bf16.gmra.mrb[0].mxu0 %v373
  %v472 = vpop.f32.mrb[0].mxu0
  %v473 = vadd.f32 0.0, %v472
  %v474 = vpop.f32.mrb[0].mxu0
  %v475 = vadd.f32 0.0, %v474
  %v476 = vpop.f32.mrb[0].mxu0
  %v477 = vadd.f32 0.0, %v476
  %v478 = vpop.f32.mrb[0].mxu0
  %v479 = vadd.f32 0.0, %v478
  %480 = vmatprep.mubr.bf16.mxu0 0
  %481 = vmatmul.mubr.bf16.gmra.mrb[0].mxu0 %v376
  %v482 = vpop.f32.mrb[0].mxu0
  %v483 = vadd.f32 0.0, %v482
  %v484 = vpop.f32.mrb[0].mxu0
  %v485 = vadd.f32 0.0, %v484
  %v486 = vpop.f32.mrb[0].mxu0
  %v487 = vadd.f32 0.0, %v486
  %v488 = vpop.f32.mrb[0].mxu0
  %v489 = vadd.f32 0.0, %v488
  %490 = vdwg.mxu0
  %vm507 = vcmask 1046528
  %v508 = vrot.slane %v413, 1
  %v509 = vrot.slane %v417, 1
  %v510 = vsel %vm507, %v508, %v509
  %v511 = vrot.slane %v423, 1
  %v512 = vrot.slane %v427, 1
  %v513 = vsel %vm507, %v511, %v512
  %v514 = vrot.slane %v433, 1
  %v515 = vrot.slane %v437, 1
  %v516 = vsel %vm507, %v514, %v515
  %v517 = vrot.slane %v443, 1
  %v518 = vrot.slane %v447, 1
  %v519 = vsel %vm507, %v517, %v518
  %v520 = vrot.slane %v453, 1
  %v521 = vrot.slane %v457, 1
  %v522 = vsel %vm507, %v520, %v521
  %v523 = vrot.slane %v463, 1
  %v524 = vrot.slane %v467, 1
  %v525 = vsel %vm507, %v523, %v524
  %v526 = vrot.slane %v473, 1
  %v527 = vrot.slane %v477, 1
  %v528 = vsel %vm507, %v526, %v527
  %v529 = vrot.slane %v483, 1
  %v530 = vrot.slane %v487, 1
  %v531 = vsel %vm507, %v529, %v530
  %532 = vrot.lane.b32.xlu0 %v510, 112
  %v533 = vpop.permute.xlu0 %532
  %534 = vrot.lane.b32.xlu0 %v509, 112
  %v535 = vpop.permute.xlu0 %534
  %536 = vrot.lane.b32.xlu0 %v513, 112
  %v537 = vpop.permute.xlu0 %536
  %538 = vrot.lane.b32.xlu0 %v512, 112
  %v539 = vpop.permute.xlu0 %538
  %540 = vrot.lane.b32.xlu0 %v516, 112
  %v541 = vpop.permute.xlu0 %540
  %542 = vrot.lane.b32.xlu0 %v515, 112
  %v543 = vpop.permute.xlu0 %542
  %544 = vrot.lane.b32.xlu0 %v519, 112
  %v545 = vpop.permute.xlu0 %544
  %546 = vrot.lane.b32.xlu0 %v518, 112
  %v547 = vpop.permute.xlu0 %546
  %548 = vrot.lane.b32.xlu0 %v522, 112
  %v549 = vpop.permute.xlu0 %548
  %550 = vrot.lane.b32.xlu0 %v521, 112
  %v551 = vpop.permute.xlu0 %550
  %552 = vrot.lane.b32.xlu0 %v525, 112
  %v553 = vpop.permute.xlu0 %552
  %554 = vrot.lane.b32.xlu0 %v524, 112
  %v555 = vpop.permute.xlu0 %554
  %556 = vrot.lane.b32.xlu0 %v528, 112
  %v557 = vpop.permute.xlu0 %556
  %558 = vrot.lane.b32.xlu0 %v527, 112
  %v559 = vpop.permute.xlu0 %558
  %560 = vrot.lane.b32.xlu0 %v531, 112
  %v561 = vpop.permute.xlu0 %560
  %562 = vrot.lane.b32.xlu0 %v530, 112
  %v563 = vpop.permute.xlu0 %562
  %v580 = vadd.f32 %v413, %v533
  %v581 = vadd.f32 %v417, %v535
  %v582 = vadd.f32 %v423, %v537
  %v583 = vadd.f32 %v427, %v539
  %v584 = vadd.f32 %v433, %v541
  %v585 = vadd.f32 %v437, %v543
  %v586 = vadd.f32 %v443, %v545
  %v587 = vadd.f32 %v447, %v547
  %v588 = vadd.f32 %v453, %v549
  %v589 = vadd.f32 %v457, %v551
  %v590 = vadd.f32 %v463, %v553
  %v591 = vadd.f32 %v467, %v555
  %v592 = vadd.f32 %v473, %v557
  %v593 = vadd.f32 %v477, %v559
  %v594 = vadd.f32 %v483, %v561
  %v595 = vadd.f32 %v487, %v563
  %vm596 = vcmask 1045504
  %v597 = vrot.slane %v413, 2
  %v598 = vrot.slane %v417, 2
  %v599 = vsel %vm596, %v597, %v598
  %v600 = vrot.slane %v423, 2
  %v601 = vrot.slane %v427, 2
  %v602 = vsel %vm596, %v600, %v601
  %v603 = vrot.slane %v433, 2
  %v604 = vrot.slane %v437, 2
  %v605 = vsel %vm596, %v603, %v604
  %v606 = vrot.slane %v443, 2
  %v607 = vrot.slane %v447, 2
  %v608 = vsel %vm596, %v606, %v607
  %v609 = vrot.slane %v453, 2
  %v610 = vrot.slane %v457, 2
  %v611 = vsel %vm596, %v609, %v610
  %v612 = vrot.slane %v463, 2
  %v613 = vrot.slane %v467, 2
  %v614 = vsel %vm596, %v612, %v613
  %v615 = vrot.slane %v473, 2
  %v616 = vrot.slane %v477, 2
  %v617 = vsel %vm596, %v615, %v616
  %v618 = vrot.slane %v483, 2
  %v619 = vrot.slane %v487, 2
  %v620 = vsel %vm596, %v618, %v619
  %621 = vrot.lane.b32.xlu0 %v599, 96
  %v622 = vpop.permute.xlu0 %621
  %623 = vrot.lane.b32.xlu0 %v598, 96
  %v624 = vpop.permute.xlu0 %623
  %625 = vrot.lane.b32.xlu0 %v602, 96
  %v626 = vpop.permute.xlu0 %625
  %627 = vrot.lane.b32.xlu0 %v601, 96
  %v628 = vpop.permute.xlu0 %627
  %629 = vrot.lane.b32.xlu0 %v605, 96
  %v630 = vpop.permute.xlu0 %629
  %631 = vrot.lane.b32.xlu0 %v604, 96
  %v632 = vpop.permute.xlu0 %631
  %633 = vrot.lane.b32.xlu0 %v608, 96
  %v634 = vpop.permute.xlu0 %633
  %635 = vrot.lane.b32.xlu0 %v607, 96
  %v636 = vpop.permute.xlu0 %635
  %637 = vrot.lane.b32.xlu0 %v611, 96
  %v638 = vpop.permute.xlu0 %637
  %639 = vrot.lane.b32.xlu0 %v610, 96
  %v640 = vpop.permute.xlu0 %639
  %641 = vrot.lane.b32.xlu0 %v614, 96
  %v642 = vpop.permute.xlu0 %641
  %643 = vrot.lane.b32.xlu0 %v613, 96
  %v644 = vpop.permute.xlu0 %643
  %645 = vrot.lane.b32.xlu0 %v617, 96
  %v646 = vpop.permute.xlu0 %645
  %647 = vrot.lane.b32.xlu0 %v616, 96
  %v648 = vpop.permute.xlu0 %647
  %649 = vrot.lane.b32.xlu0 %v620, 96
  %v650 = vpop.permute.xlu0 %649
  %651 = vrot.lane.b32.xlu0 %v619, 96
  %v652 = vpop.permute.xlu0 %651
  %v669 = vadd.f32 %v580, %v622
  %v670 = vadd.f32 %v581, %v624
  %v671 = vadd.f32 %v582, %v626
  %v672 = vadd.f32 %v583, %v628
  %v673 = vadd.f32 %v584, %v630
  %v674 = vadd.f32 %v585, %v632
  %v675 = vadd.f32 %v586, %v634
  %v676 = vadd.f32 %v587, %v636
  %v677 = vadd.f32 %v588, %v638
  %v678 = vadd.f32 %v589, %v640
  %v679 = vadd.f32 %v590, %v642
  %v680 = vadd.f32 %v591, %v644
  %v681 = vadd.f32 %v592, %v646
  %v682 = vadd.f32 %v593, %v648
  %v683 = vadd.f32 %v594, %v650
  %v684 = vadd.f32 %v595, %v652
  %vm685 = vcmask 130048
  %v686 = vsel %vm685, %v669, -inf
  %vm687 = vcmask 128000
  %v688 = vsel %vm687, %v670, -inf
  %v689 = vmax.f32 %v686, %v688
  %v690 = vrot.slane %v689, 4
  %v691 = vmax.f32 %v689, %v690
  %v692 = vrot.slane %v691, 2
  %v693 = vmax.f32 %v691, %v692
  %v694 = vrot.slane %v693, 1
  %v695 = vmax.f32 %v693, %v694
  %v696 = vsel %vm685, %v671, -inf
  %v697 = vsel %vm687, %v672, -inf
  %v698 = vmax.f32 %v696, %v697
  %v699 = vrot.slane %v698, 4
  %v700 = vmax.f32 %v698, %v699
  %v701 = vrot.slane %v700, 2
  %v702 = vmax.f32 %v700, %v701
  %v703 = vrot.slane %v702, 1
  %v704 = vmax.f32 %v702, %v703
  %v705 = vsel %vm685, %v673, -inf
  %v706 = vsel %vm687, %v674, -inf
  %v707 = vmax.f32 %v705, %v706
  %v708 = vrot.slane %v707, 4
  %v709 = vmax.f32 %v707, %v708
  %v710 = vrot.slane %v709, 2
  %v711 = vmax.f32 %v709, %v710
  %v712 = vrot.slane %v711, 1
  %v713 = vmax.f32 %v711, %v712
  %v714 = vsel %vm685, %v675, -inf
  %v715 = vsel %vm687, %v676, -inf
  %v716 = vmax.f32 %v714, %v715
  %v717 = vrot.slane %v716, 4
  %v718 = vmax.f32 %v716, %v717
  %v719 = vrot.slane %v718, 2
  %v720 = vmax.f32 %v718, %v719
  %v721 = vrot.slane %v720, 1
  %v722 = vmax.f32 %v720, %v721
  %v723 = vsel %vm685, %v677, -inf
  %v724 = vsel %vm687, %v678, -inf
  %v725 = vmax.f32 %v723, %v724
  %v726 = vrot.slane %v725, 4
  %v727 = vmax.f32 %v725, %v726
  %v728 = vrot.slane %v727, 2
  %v729 = vmax.f32 %v727, %v728
  %v730 = vrot.slane %v729, 1
  %v731 = vmax.f32 %v729, %v730
  %v732 = vsel %vm685, %v679, -inf
  %v733 = vsel %vm687, %v680, -inf
  %v734 = vmax.f32 %v732, %v733
  %v735 = vrot.slane %v734, 4
  %v736 = vmax.f32 %v734, %v735
  %v737 = vrot.slane %v736, 2
  %v738 = vmax.f32 %v736, %v737
  %v739 = vrot.slane %v738, 1
  %v740 = vmax.f32 %v738, %v739
  %v741 = vsel %vm685, %v681, -inf
  %v742 = vsel %vm687, %v682, -inf
  %v743 = vmax.f32 %v741, %v742
  %v744 = vrot.slane %v743, 4
  %v745 = vmax.f32 %v743, %v744
  %v746 = vrot.slane %v745, 2
  %v747 = vmax.f32 %v745, %v746
  %v748 = vrot.slane %v747, 1
  %v749 = vmax.f32 %v747, %v748
  %v750 = vsel %vm685, %v683, -inf
  %v751 = vsel %vm687, %v684, -inf
  %v752 = vmax.f32 %v750, %v751
  %v753 = vrot.slane %v752, 4
  %v754 = vmax.f32 %v752, %v753
  %v755 = vrot.slane %v754, 2
  %v756 = vmax.f32 %v754, %v755
  %v757 = vrot.slane %v756, 1
  %v758 = vmax.f32 %v756, %v757
  %vm759 = vcmask 1044480
  %v760 = vrot.slane %v413, 3
  %v761 = vrot.slane %v417, 3
  %v762 = vsel %vm759, %v760, %v761
  %v763 = vrot.slane %v423, 3
  %v764 = vrot.slane %v427, 3
  %v765 = vsel %vm759, %v763, %v764
  %v766 = vrot.slane %v433, 3
  %v767 = vrot.slane %v437, 3
  %v768 = vsel %vm759, %v766, %v767
  %v769 = vrot.slane %v443, 3
  %v770 = vrot.slane %v447, 3
  %v771 = vsel %vm759, %v769, %v770
  %v772 = vrot.slane %v453, 3
  %v773 = vrot.slane %v457, 3
  %v774 = vsel %vm759, %v772, %v773
  %v775 = vrot.slane %v463, 3
  %v776 = vrot.slane %v467, 3
  %v777 = vsel %vm759, %v775, %v776
  %v778 = vrot.slane %v473, 3
  %v779 = vrot.slane %v477, 3
  %v780 = vsel %vm759, %v778, %v779
  %v781 = vrot.slane %v483, 3
  %v782 = vrot.slane %v487, 3
  %v783 = vsel %vm759, %v781, %v782
  %784 = vrot.lane.b32.xlu0 %v762, 80
  %v785 = vpop.permute.xlu0 %784
  %786 = vrot.lane.b32.xlu0 %v761, 80
  %v787 = vpop.permute.xlu0 %786
  %788 = vrot.lane.b32.xlu0 %v765, 80
  %v789 = vpop.permute.xlu0 %788
  %790 = vrot.lane.b32.xlu0 %v764, 80
  %v791 = vpop.permute.xlu0 %790
  %792 = vrot.lane.b32.xlu0 %v768, 80
  %v793 = vpop.permute.xlu0 %792
  %794 = vrot.lane.b32.xlu0 %v767, 80
  %v795 = vpop.permute.xlu0 %794
  %796 = vrot.lane.b32.xlu0 %v771, 80
  %v797 = vpop.permute.xlu0 %796
  %798 = vrot.lane.b32.xlu0 %v770, 80
  %v799 = vpop.permute.xlu0 %798
  %800 = vrot.lane.b32.xlu0 %v774, 80
  %v801 = vpop.permute.xlu0 %800
  %802 = vrot.lane.b32.xlu0 %v773, 80
  %v803 = vpop.permute.xlu0 %802
  %804 = vrot.lane.b32.xlu0 %v777, 80
  %v805 = vpop.permute.xlu0 %804
  %806 = vrot.lane.b32.xlu0 %v776, 80
  %v807 = vpop.permute.xlu0 %806
  %808 = vrot.lane.b32.xlu0 %v780, 80
  %v809 = vpop.permute.xlu0 %808
  %810 = vrot.lane.b32.xlu0 %v779, 80
  %v811 = vpop.permute.xlu0 %810
  %812 = vrot.lane.b32.xlu0 %v783, 80
  %v813 = vpop.permute.xlu0 %812
  %814 = vrot.lane.b32.xlu0 %v782, 80
  %v815 = vpop.permute.xlu0 %814
  %v832 = vadd.f32 %v669, %v785
  %v833 = vadd.f32 %v670, %v787
  %v834 = vadd.f32 %v671, %v789
  %v835 = vadd.f32 %v672, %v791
  %v836 = vadd.f32 %v673, %v793
  %v837 = vadd.f32 %v674, %v795
  %v838 = vadd.f32 %v675, %v797
  %v839 = vadd.f32 %v676, %v799
  %v840 = vadd.f32 %v677, %v801
  %v841 = vadd.f32 %v678, %v803
  %v842 = vadd.f32 %v679, %v805
  %v843 = vadd.f32 %v680, %v807
  %v844 = vadd.f32 %v681, %v809
  %v845 = vadd.f32 %v682, %v811
  %v846 = vadd.f32 %v683, %v813
  %v847 = vadd.f32 %v684, %v815
  %vm848 = vcmask 523648
  %v849 = vsel %vm848, %v832, -inf
  %vm850 = vcmask 520576
  %v851 = vsel %vm850, %v833, -inf
  %v852 = vmax.f32 %v849, %v851
  %v853 = vrot.slane %v852, 4
  %v854 = vmax.f32 %v852, %v853
  %v855 = vrot.slane %v854, 2
  %v856 = vmax.f32 %v854, %v855
  %v857 = vrot.slane %v856, 1
  %v858 = vmax.f32 %v856, %v857
  %v859 = vsel %vm848, %v834, -inf
  %v860 = vsel %vm850, %v835, -inf
  %v861 = vmax.f32 %v859, %v860
  %v862 = vrot.slane %v861, 4
  %v863 = vmax.f32 %v861, %v862
  %v864 = vrot.slane %v863, 2
  %v865 = vmax.f32 %v863, %v864
  %v866 = vrot.slane %v865, 1
  %v867 = vmax.f32 %v865, %v866
  %v868 = vsel %vm848, %v836, -inf
  %v869 = vsel %vm850, %v837, -inf
  %v870 = vmax.f32 %v868, %v869
  %v871 = vrot.slane %v870, 4
  %v872 = vmax.f32 %v870, %v871
  %v873 = vrot.slane %v872, 2
  %v874 = vmax.f32 %v872, %v873
  %v875 = vrot.slane %v874, 1
  %v876 = vmax.f32 %v874, %v875
  %v877 = vsel %vm848, %v838, -inf
  %v878 = vsel %vm850, %v839, -inf
  %v879 = vmax.f32 %v877, %v878
  %v880 = vrot.slane %v879, 4
  %v881 = vmax.f32 %v879, %v880
  %v882 = vrot.slane %v881, 2
  %v883 = vmax.f32 %v881, %v882
  %v884 = vrot.slane %v883, 1
  %v885 = vmax.f32 %v883, %v884
  %v886 = vsel %vm848, %v840, -inf
  %v887 = vsel %vm850, %v841, -inf
  %v888 = vmax.f32 %v886, %v887
  %v889 = vrot.slane %v888, 4
  %v890 = vmax.f32 %v888, %v889
  %v891 = vrot.slane %v890, 2
  %v892 = vmax.f32 %v890, %v891
  %v893 = vrot.slane %v892, 1
  %v894 = vmax.f32 %v892, %v893
  %v895 = vsel %vm848, %v842, -inf
  %v896 = vsel %vm850, %v843, -inf
  %v897 = vmax.f32 %v895, %v896
  %v898 = vrot.slane %v897, 4
  %v899 = vmax.f32 %v897, %v898
  %v900 = vrot.slane %v899, 2
  %v901 = vmax.f32 %v899, %v900
  %v902 = vrot.slane %v901, 1
  %v903 = vmax.f32 %v901, %v902
  %v904 = vsel %vm848, %v844, -inf
  %v905 = vsel %vm850, %v845, -inf
  %v906 = vmax.f32 %v904, %v905
  %v907 = vrot.slane %v906, 4
  %v908 = vmax.f32 %v906, %v907
  %v909 = vrot.slane %v908, 2
  %v910 = vmax.f32 %v908, %v909
  %v911 = vrot.slane %v910, 1
  %v912 = vmax.f32 %v910, %v911
  %v913 = vsel %vm848, %v846, -inf
  %v914 = vsel %vm850, %v847, -inf
  %v915 = vmax.f32 %v913, %v914
  %v916 = vrot.slane %v915, 4
  %v917 = vmax.f32 %v915, %v916
  %v918 = vrot.slane %v917, 2
  %v919 = vmax.f32 %v917, %v918
  %v920 = vrot.slane %v919, 1
  %v921 = vmax.f32 %v919, %v920
  %v938 = vrot.slane %v415, 1
  %v939 = vrot.slane %v419, 1
  %v940 = vsel %vm507, %v938, %v939
  %v941 = vrot.slane %v425, 1
  %v942 = vrot.slane %v429, 1
  %v943 = vsel %vm507, %v941, %v942
  %v944 = vrot.slane %v435, 1
  %v945 = vrot.slane %v439, 1
  %v946 = vsel %vm507, %v944, %v945
  %v947 = vrot.slane %v445, 1
  %v948 = vrot.slane %v449, 1
  %v949 = vsel %vm507, %v947, %v948
  %v950 = vrot.slane %v455, 1
  %v951 = vrot.slane %v459, 1
  %v952 = vsel %vm507, %v950, %v951
  %v953 = vrot.slane %v465, 1
  %v954 = vrot.slane %v469, 1
  %v955 = vsel %vm507, %v953, %v954
  %v956 = vrot.slane %v475, 1
  %v957 = vrot.slane %v479, 1
  %v958 = vsel %vm507, %v956, %v957
  %v959 = vrot.slane %v485, 1
  %v960 = vrot.slane %v489, 1
  %v961 = vsel %vm507, %v959, %v960
  %962 = vrot.lane.b32.xlu0 %v940, 112
  %v963 = vpop.permute.xlu0 %962
  %964 = vrot.lane.b32.xlu0 %v939, 112
  %v965 = vpop.permute.xlu0 %964
  %966 = vrot.lane.b32.xlu0 %v943, 112
  %v967 = vpop.permute.xlu0 %966
  %968 = vrot.lane.b32.xlu0 %v942, 112
  %v969 = vpop.permute.xlu0 %968
  %970 = vrot.lane.b32.xlu0 %v946, 112
  %v971 = vpop.permute.xlu0 %970
  %972 = vrot.lane.b32.xlu0 %v945, 112
  %v973 = vpop.permute.xlu0 %972
  %974 = vrot.lane.b32.xlu0 %v949, 112
  %v975 = vpop.permute.xlu0 %974
  %976 = vrot.lane.b32.xlu0 %v948, 112
  %v977 = vpop.permute.xlu0 %976
  %978 = vrot.lane.b32.xlu0 %v952, 112
  %v979 = vpop.permute.xlu0 %978
  %980 = vrot.lane.b32.xlu0 %v951, 112
  %v981 = vpop.permute.xlu0 %980
  %982 = vrot.lane.b32.xlu0 %v955, 112
  %v983 = vpop.permute.xlu0 %982
  %984 = vrot.lane.b32.xlu0 %v954, 112
  %v985 = vpop.permute.xlu0 %984
  %986 = vrot.lane.b32.xlu0 %v958, 112
  %v987 = vpop.permute.xlu0 %986
  %988 = vrot.lane.b32.xlu0 %v957, 112
  %v989 = vpop.permute.xlu0 %988
  %990 = vrot.lane.b32.xlu0 %v961, 112
  %v991 = vpop.permute.xlu0 %990
  %992 = vrot.lane.b32.xlu0 %v960, 112
  %v993 = vpop.permute.xlu0 %992
  %v1010 = vadd.f32 %v413, %v963
  %v1011 = vadd.f32 %v417, %v965
  %v1012 = vadd.f32 %v423, %v967
  %v1013 = vadd.f32 %v427, %v969
  %v1014 = vadd.f32 %v433, %v971
  %v1015 = vadd.f32 %v437, %v973
  %v1016 = vadd.f32 %v443, %v975
  %v1017 = vadd.f32 %v447, %v977
  %v1018 = vadd.f32 %v453, %v979
  %v1019 = vadd.f32 %v457, %v981
  %v1020 = vadd.f32 %v463, %v983
  %v1021 = vadd.f32 %v467, %v985
  %v1022 = vadd.f32 %v473, %v987
  %v1023 = vadd.f32 %v477, %v989
  %v1024 = vadd.f32 %v483, %v991
  %v1025 = vadd.f32 %v487, %v993
  %v1026 = vrot.slane %v415, 2
  %v1027 = vrot.slane %v419, 2
  %v1028 = vsel %vm596, %v1026, %v1027
  %v1029 = vrot.slane %v425, 2
  %v1030 = vrot.slane %v429, 2
  %v1031 = vsel %vm596, %v1029, %v1030
  %v1032 = vrot.slane %v435, 2
  %v1033 = vrot.slane %v439, 2
  %v1034 = vsel %vm596, %v1032, %v1033
  %v1035 = vrot.slane %v445, 2
  %v1036 = vrot.slane %v449, 2
  %v1037 = vsel %vm596, %v1035, %v1036
  %v1038 = vrot.slane %v455, 2
  %v1039 = vrot.slane %v459, 2
  %v1040 = vsel %vm596, %v1038, %v1039
  %v1041 = vrot.slane %v465, 2
  %v1042 = vrot.slane %v469, 2
  %v1043 = vsel %vm596, %v1041, %v1042
  %v1044 = vrot.slane %v475, 2
  %v1045 = vrot.slane %v479, 2
  %v1046 = vsel %vm596, %v1044, %v1045
  %v1047 = vrot.slane %v485, 2
  %v1048 = vrot.slane %v489, 2
  %v1049 = vsel %vm596, %v1047, %v1048
  %1050 = vrot.lane.b32.xlu0 %v1028, 96
  %v1051 = vpop.permute.xlu0 %1050
  %1052 = vrot.lane.b32.xlu0 %v1027, 96
  %v1053 = vpop.permute.xlu0 %1052
  %1054 = vrot.lane.b32.xlu0 %v1031, 96
  %v1055 = vpop.permute.xlu0 %1054
  %1056 = vrot.lane.b32.xlu0 %v1030, 96
  %v1057 = vpop.permute.xlu0 %1056
  %1058 = vrot.lane.b32.xlu0 %v1034, 96
  %v1059 = vpop.permute.xlu0 %1058
  %1060 = vrot.lane.b32.xlu0 %v1033, 96
  %v1061 = vpop.permute.xlu0 %1060
  %1062 = vrot.lane.b32.xlu0 %v1037, 96
  %v1063 = vpop.permute.xlu0 %1062
  %1064 = vrot.lane.b32.xlu0 %v1036, 96
  %v1065 = vpop.permute.xlu0 %1064
  %1066 = vrot.lane.b32.xlu0 %v1040, 96
  %v1067 = vpop.permute.xlu0 %1066
  %1068 = vrot.lane.b32.xlu0 %v1039, 96
  %v1069 = vpop.permute.xlu0 %1068
  %1070 = vrot.lane.b32.xlu0 %v1043, 96
  %v1071 = vpop.permute.xlu0 %1070
  %1072 = vrot.lane.b32.xlu0 %v1042, 96
  %v1073 = vpop.permute.xlu0 %1072
  %1074 = vrot.lane.b32.xlu0 %v1046, 96
  %v1075 = vpop.permute.xlu0 %1074
  %1076 = vrot.lane.b32.xlu0 %v1045, 96
  %v1077 = vpop.permute.xlu0 %1076
  %1078 = vrot.lane.b32.xlu0 %v1049, 96
  %v1079 = vpop.permute.xlu0 %1078
  %1080 = vrot.lane.b32.xlu0 %v1048, 96
  %v1081 = vpop.permute.xlu0 %1080
  %v1098 = vadd.f32 %v1010, %v1051
  %v1099 = vadd.f32 %v1011, %v1053
  %v1100 = vadd.f32 %v1012, %v1055
  %v1101 = vadd.f32 %v1013, %v1057
  %v1102 = vadd.f32 %v1014, %v1059
  %v1103 = vadd.f32 %v1015, %v1061
  %v1104 = vadd.f32 %v1016, %v1063
  %v1105 = vadd.f32 %v1017, %v1065
  %v1106 = vadd.f32 %v1018, %v1067
  %v1107 = vadd.f32 %v1019, %v1069
  %v1108 = vadd.f32 %v1020, %v1071
  %v1109 = vadd.f32 %v1021, %v1073
  %v1110 = vadd.f32 %v1022, %v1075
  %v1111 = vadd.f32 %v1023, %v1077
  %v1112 = vadd.f32 %v1024, %v1079
  %v1113 = vadd.f32 %v1025, %v1081
  %v1114 = vrot.slane %v415, 3
  %v1115 = vrot.slane %v419, 3
  %v1116 = vsel %vm759, %v1114, %v1115
  %v1117 = vrot.slane %v425, 3
  %v1118 = vrot.slane %v429, 3
  %v1119 = vsel %vm759, %v1117, %v1118
  %v1120 = vrot.slane %v435, 3
  %v1121 = vrot.slane %v439, 3
  %v1122 = vsel %vm759, %v1120, %v1121
  %v1123 = vrot.slane %v445, 3
  %v1124 = vrot.slane %v449, 3
  %v1125 = vsel %vm759, %v1123, %v1124
  %v1126 = vrot.slane %v455, 3
  %v1127 = vrot.slane %v459, 3
  %v1128 = vsel %vm759, %v1126, %v1127
  %v1129 = vrot.slane %v465, 3
  %v1130 = vrot.slane %v469, 3
  %v1131 = vsel %vm759, %v1129, %v1130
  %v1132 = vrot.slane %v475, 3
  %v1133 = vrot.slane %v479, 3
  %v1134 = vsel %vm759, %v1132, %v1133
  %v1135 = vrot.slane %v485, 3
  %v1136 = vrot.slane %v489, 3
  %v1137 = vsel %vm759, %v1135, %v1136
  %1138 = vrot.lane.b32.xlu0 %v1116, 80
  %v1139 = vpop.permute.xlu0 %1138
  %1140 = vrot.lane.b32.xlu0 %v1115, 80
  %v1141 = vpop.permute.xlu0 %1140
  %1142 = vrot.lane.b32.xlu0 %v1119, 80
  %v1143 = vpop.permute.xlu0 %1142
  %1144 = vrot.lane.b32.xlu0 %v1118, 80
  %v1145 = vpop.permute.xlu0 %1144
  %1146 = vrot.lane.b32.xlu0 %v1122, 80
  %v1147 = vpop.permute.xlu0 %1146
  %1148 = vrot.lane.b32.xlu0 %v1121, 80
  %v1149 = vpop.permute.xlu0 %1148
  %1150 = vrot.lane.b32.xlu0 %v1125, 80
  %v1151 = vpop.permute.xlu0 %1150
  %1152 = vrot.lane.b32.xlu0 %v1124, 80
  %v1153 = vpop.permute.xlu0 %1152
  %1154 = vrot.lane.b32.xlu0 %v1128, 80
  %v1155 = vpop.permute.xlu0 %1154
  %1156 = vrot.lane.b32.xlu0 %v1127, 80
  %v1157 = vpop.permute.xlu0 %1156
  %1158 = vrot.lane.b32.xlu0 %v1131, 80
  %v1159 = vpop.permute.xlu0 %1158
  %1160 = vrot.lane.b32.xlu0 %v1130, 80
  %v1161 = vpop.permute.xlu0 %1160
  %1162 = vrot.lane.b32.xlu0 %v1134, 80
  %v1163 = vpop.permute.xlu0 %1162
  %1164 = vrot.lane.b32.xlu0 %v1133, 80
  %v1165 = vpop.permute.xlu0 %1164
  %1166 = vrot.lane.b32.xlu0 %v1137, 80
  %v1167 = vpop.permute.xlu0 %1166
  %1168 = vrot.lane.b32.xlu0 %v1136, 80
  %v1169 = vpop.permute.xlu0 %1168
  %v1186 = vadd.f32 %v1098, %v1139
  %v1187 = vadd.f32 %v1099, %v1141
  %v1188 = vadd.f32 %v1100, %v1143
  %v1189 = vadd.f32 %v1101, %v1145
  %v1190 = vadd.f32 %v1102, %v1147
  %v1191 = vadd.f32 %v1103, %v1149
  %v1192 = vadd.f32 %v1104, %v1151
  %v1193 = vadd.f32 %v1105, %v1153
  %v1194 = vadd.f32 %v1106, %v1155
  %v1195 = vadd.f32 %v1107, %v1157
  %v1196 = vadd.f32 %v1108, %v1159
  %v1197 = vadd.f32 %v1109, %v1161
  %v1198 = vadd.f32 %v1110, %v1163
  %v1199 = vadd.f32 %v1111, %v1165
  %v1200 = vadd.f32 %v1112, %v1167
  %v1201 = vadd.f32 %v1113, %v1169
  %vm1202 = vcmask 1043456
  %v1203 = vrot.slane %v415, 4
  %v1204 = vrot.slane %v419, 4
  %v1205 = vsel %vm1202, %v1203, %v1204
  %v1206 = vrot.slane %v425, 4
  %v1207 = vrot.slane %v429, 4
  %v1208 = vsel %vm1202, %v1206, %v1207
  %v1209 = vrot.slane %v435, 4
  %v1210 = vrot.slane %v439, 4
  %v1211 = vsel %vm1202, %v1209, %v1210
  %v1212 = vrot.slane %v445, 4
  %v1213 = vrot.slane %v449, 4
  %v1214 = vsel %vm1202, %v1212, %v1213
  %v1215 = vrot.slane %v455, 4
  %v1216 = vrot.slane %v459, 4
  %v1217 = vsel %vm1202, %v1215, %v1216
  %v1218 = vrot.slane %v465, 4
  %v1219 = vrot.slane %v469, 4
  %v1220 = vsel %vm1202, %v1218, %v1219
  %v1221 = vrot.slane %v475, 4
  %v1222 = vrot.slane %v479, 4
  %v1223 = vsel %vm1202, %v1221, %v1222
  %v1224 = vrot.slane %v485, 4
  %v1225 = vrot.slane %v489, 4
  %v1226 = vsel %vm1202, %v1224, %v1225
  %1227 = vrot.lane.b32.xlu0 %v1205, 64
  %v1228 = vpop.permute.xlu0 %1227
  %1229 = vrot.lane.b32.xlu0 %v1204, 64
  %v1230 = vpop.permute.xlu0 %1229
  %1231 = vrot.lane.b32.xlu0 %v1208, 64
  %v1232 = vpop.permute.xlu0 %1231
  %1233 = vrot.lane.b32.xlu0 %v1207, 64
  %v1234 = vpop.permute.xlu0 %1233
  %1235 = vrot.lane.b32.xlu0 %v1211, 64
  %v1236 = vpop.permute.xlu0 %1235
  %1237 = vrot.lane.b32.xlu0 %v1210, 64
  %v1238 = vpop.permute.xlu0 %1237
  %1239 = vrot.lane.b32.xlu0 %v1214, 64
  %v1240 = vpop.permute.xlu0 %1239
  %1241 = vrot.lane.b32.xlu0 %v1213, 64
  %v1242 = vpop.permute.xlu0 %1241
  %1243 = vrot.lane.b32.xlu0 %v1217, 64
  %v1244 = vpop.permute.xlu0 %1243
  %1245 = vrot.lane.b32.xlu0 %v1216, 64
  %v1246 = vpop.permute.xlu0 %1245
  %1247 = vrot.lane.b32.xlu0 %v1220, 64
  %v1248 = vpop.permute.xlu0 %1247
  %1249 = vrot.lane.b32.xlu0 %v1219, 64
  %v1250 = vpop.permute.xlu0 %1249
  %1251 = vrot.lane.b32.xlu0 %v1223, 64
  %v1252 = vpop.permute.xlu0 %1251
  %1253 = vrot.lane.b32.xlu0 %v1222, 64
  %v1254 = vpop.permute.xlu0 %1253
  %1255 = vrot.lane.b32.xlu0 %v1226, 64
  %v1256 = vpop.permute.xlu0 %1255
  %1257 = vrot.lane.b32.xlu0 %v1225, 64
  %v1258 = vpop.permute.xlu0 %1257
  %v1275 = vadd.f32 %v1186, %v1228
  %v1276 = vadd.f32 %v1187, %v1230
  %v1277 = vadd.f32 %v1188, %v1232
  %v1278 = vadd.f32 %v1189, %v1234
  %v1279 = vadd.f32 %v1190, %v1236
  %v1280 = vadd.f32 %v1191, %v1238
  %v1281 = vadd.f32 %v1192, %v1240
  %v1282 = vadd.f32 %v1193, %v1242
  %v1283 = vadd.f32 %v1194, %v1244
  %v1284 = vadd.f32 %v1195, %v1246
  %v1285 = vadd.f32 %v1196, %v1248
  %v1286 = vadd.f32 %v1197, %v1250
  %v1287 = vadd.f32 %v1198, %v1252
  %v1288 = vadd.f32 %v1199, %v1254
  %v1289 = vadd.f32 %v1200, %v1256
  %v1290 = vadd.f32 %v1201, %v1258
  %vm1291 = vcmask 1048448
  %v1292 = vsel %vm1291, %v1275, -inf
  %vm1293 = vcmask 1044352
  %v1294 = vsel %vm1293, %v1276, -inf
  %v1295 = vmax.f32 %v1292, %v1294
  %v1296 = vrot.slane %v1295, 4
  %v1297 = vmax.f32 %v1295, %v1296
  %v1298 = vrot.slane %v1297, 2
  %v1299 = vmax.f32 %v1297, %v1298
  %v1300 = vrot.slane %v1299, 1
  %v1301 = vmax.f32 %v1299, %v1300
  %v1302 = vsel %vm1291, %v1277, -inf
  %v1303 = vsel %vm1293, %v1278, -inf
  %v1304 = vmax.f32 %v1302, %v1303
  %v1305 = vrot.slane %v1304, 4
  %v1306 = vmax.f32 %v1304, %v1305
  %v1307 = vrot.slane %v1306, 2
  %v1308 = vmax.f32 %v1306, %v1307
  %v1309 = vrot.slane %v1308, 1
  %v1310 = vmax.f32 %v1308, %v1309
  %v1311 = vsel %vm1291, %v1279, -inf
  %v1312 = vsel %vm1293, %v1280, -inf
  %v1313 = vmax.f32 %v1311, %v1312
  %v1314 = vrot.slane %v1313, 4
  %v1315 = vmax.f32 %v1313, %v1314
  %v1316 = vrot.slane %v1315, 2
  %v1317 = vmax.f32 %v1315, %v1316
  %v1318 = vrot.slane %v1317, 1
  %v1319 = vmax.f32 %v1317, %v1318
  %v1320 = vsel %vm1291, %v1281, -inf
  %v1321 = vsel %vm1293, %v1282, -inf
  %v1322 = vmax.f32 %v1320, %v1321
  %v1323 = vrot.slane %v1322, 4
  %v1324 = vmax.f32 %v1322, %v1323
  %v1325 = vrot.slane %v1324, 2
  %v1326 = vmax.f32 %v1324, %v1325
  %v1327 = vrot.slane %v1326, 1
  %v1328 = vmax.f32 %v1326, %v1327
  %v1329 = vsel %vm1291, %v1283, -inf
  %v1330 = vsel %vm1293, %v1284, -inf
  %v1331 = vmax.f32 %v1329, %v1330
  %v1332 = vrot.slane %v1331, 4
  %v1333 = vmax.f32 %v1331, %v1332
  %v1334 = vrot.slane %v1333, 2
  %v1335 = vmax.f32 %v1333, %v1334
  %v1336 = vrot.slane %v1335, 1
  %v1337 = vmax.f32 %v1335, %v1336
  %v1338 = vsel %vm1291, %v1285, -inf
  %v1339 = vsel %vm1293, %v1286, -inf
  %v1340 = vmax.f32 %v1338, %v1339
  %v1341 = vrot.slane %v1340, 4
  %v1342 = vmax.f32 %v1340, %v1341
  %v1343 = vrot.slane %v1342, 2
  %v1344 = vmax.f32 %v1342, %v1343
  %v1345 = vrot.slane %v1344, 1
  %v1346 = vmax.f32 %v1344, %v1345
  %v1347 = vsel %vm1291, %v1287, -inf
  %v1348 = vsel %vm1293, %v1288, -inf
  %v1349 = vmax.f32 %v1347, %v1348
  %v1350 = vrot.slane %v1349, 4
  %v1351 = vmax.f32 %v1349, %v1350
  %v1352 = vrot.slane %v1351, 2
  %v1353 = vmax.f32 %v1351, %v1352
  %v1354 = vrot.slane %v1353, 1
  %v1355 = vmax.f32 %v1353, %v1354
  %v1356 = vsel %vm1291, %v1289, -inf
  %v1357 = vsel %vm1293, %v1290, -inf
  %v1358 = vmax.f32 %v1356, %v1357
  %v1359 = vrot.slane %v1358, 4
  %v1360 = vmax.f32 %v1358, %v1359
  %v1361 = vrot.slane %v1360, 2
  %v1362 = vmax.f32 %v1360, %v1361
  %v1363 = vrot.slane %v1362, 1
  %v1364 = vmax.f32 %v1362, %v1363
  %v1365 = vld [vmem:[%s2] sm:$0x1]
  %v1367 = vlaneseq
  %v1368 = vshrl.u32 %v1367, 7
  %v1369 = vsub.s32 0, %v1368
  %v1370 = vrot.slane %v1365, %v1369
  %v1372 = vadd.f32 %v695, %v1370
  %v1373 = vadd.f32 %v704, %v1370
  %v1374 = vadd.f32 %v713, %v1370
  %v1375 = vadd.f32 %v722, %v1370
  %v1376 = vadd.f32 %v731, %v1370
  %v1377 = vadd.f32 %v740, %v1370
  %v1378 = vadd.f32 %v749, %v1370
  %v1379 = vadd.f32 %v758, %v1370
  %vm1380 = vcmp.gt.f32.partialorder %v1372, 0.0
  %vm1381 = vcmp.gt.f32.partialorder %v1373, 0.0
  %vm1382 = vcmp.gt.f32.partialorder %v1374, 0.0
  %vm1383 = vcmp.gt.f32.partialorder %v1375, 0.0
  %vm1384 = vcmp.gt.f32.partialorder %v1376, 0.0
  %vm1385 = vcmp.gt.f32.partialorder %v1377, 0.0
  %vm1386 = vcmp.gt.f32.partialorder %v1378, 0.0
  %vm1387 = vcmp.gt.f32.partialorder %v1379, 0.0
  %v1388 = vmul.f32 %v1372, 1.442695
  %v1389 = vpow.pop %v1388
  %v1390 = vmul.f32 %v1373, 1.442695
  %v1391 = vpow.pop %v1390
  %v1392 = vmul.f32 %v1374, 1.442695
  %v1393 = vpow.pop %v1392
  %v1394 = vmul.f32 %v1375, 1.442695
  %v1395 = vpow.pop %v1394
  %v1396 = vmul.f32 %v1376, 1.442695
  %v1397 = vpow.pop %v1396
  %v1398 = vmul.f32 %v1377, 1.442695
  %v1399 = vpow.pop %v1398
  %v1400 = vmul.f32 %v1378, 1.442695
  %v1401 = vpow.pop %v1400
  %v1402 = vmul.f32 %v1379, 1.442695
  %v1403 = vpow.pop %v1402
  %v1404 = vsub.f32 %v1389, 1.0
  %v1405 = vsub.f32 %v1391, 1.0
  %v1406 = vsub.f32 %v1393, 1.0
  %v1407 = vsub.f32 %v1395, 1.0
  %v1408 = vsub.f32 %v1397, 1.0
  %v1409 = vsub.f32 %v1399, 1.0
  %v1410 = vsub.f32 %v1401, 1.0
  %v1411 = vsub.f32 %v1403, 1.0
  %v1412 = vmul.f32 %v1404, 1.6732632
  %v1413 = vmul.f32 %v1405, 1.6732632
  %v1414 = vmul.f32 %v1406, 1.6732632
  %v1415 = vmul.f32 %v1407, 1.6732632
  %v1416 = vmul.f32 %v1408, 1.6732632
  %v1417 = vmul.f32 %v1409, 1.6732632
  %v1418 = vmul.f32 %v1410, 1.6732632
  %v1419 = vmul.f32 %v1411, 1.6732632
  %v1420 = vsel %vm1380, %v1372, %v1412
  %v1421 = vsel %vm1381, %v1373, %v1413
  %v1422 = vsel %vm1382, %v1374, %v1414
  %v1423 = vsel %vm1383, %v1375, %v1415
  %v1424 = vsel %vm1384, %v1376, %v1416
  %v1425 = vsel %vm1385, %v1377, %v1417
  %v1426 = vsel %vm1386, %v1378, %v1418
  %v1427 = vsel %vm1387, %v1379, %v1419
  %v1428 = vmul.f32 %v1420, 1.050701
  %v1429 = vmul.f32 %v1421, 1.050701
  %v1430 = vmul.f32 %v1422, 1.050701
  %v1431 = vmul.f32 %v1423, 1.050701
  %v1432 = vmul.f32 %v1424, 1.050701
  %v1433 = vmul.f32 %v1425, 1.050701
  %v1434 = vmul.f32 %v1426, 1.050701
  %v1435 = vmul.f32 %v1427, 1.050701
  %v1436 = vld [vmem:[%s3] sm:$0x1]
  %v1438 = vlaneseq
  %v1439 = vshrl.u32 %v1438, 7
  %v1440 = vsub.s32 0, %v1439
  %v1441 = vrot.slane %v1436, %v1440
  %1442 = vrot.lane.b32.xlu0 %v1441, 48
  %v1443 = vpop.permute.xlu0 %1442
  %v1445 = vadd.f32 %v858, %v1443
  %v1446 = vadd.f32 %v867, %v1443
  %v1447 = vadd.f32 %v876, %v1443
  %v1448 = vadd.f32 %v885, %v1443
  %v1449 = vadd.f32 %v894, %v1443
  %v1450 = vadd.f32 %v903, %v1443
  %v1451 = vadd.f32 %v912, %v1443
  %v1452 = vadd.f32 %v921, %v1443
  %vm1453 = vcmp.gt.f32.partialorder %v1445, 0.0
  %vm1454 = vcmp.gt.f32.partialorder %v1446, 0.0
  %vm1455 = vcmp.gt.f32.partialorder %v1447, 0.0
  %vm1456 = vcmp.gt.f32.partialorder %v1448, 0.0
  %vm1457 = vcmp.gt.f32.partialorder %v1449, 0.0
  %vm1458 = vcmp.gt.f32.partialorder %v1450, 0.0
  %vm1459 = vcmp.gt.f32.partialorder %v1451, 0.0
  %vm1460 = vcmp.gt.f32.partialorder %v1452, 0.0
  %v1461 = vmul.f32 %v1445, 1.442695
  %v1462 = vpow.pop %v1461
  %v1463 = vmul.f32 %v1446, 1.442695
  %v1464 = vpow.pop %v1463
  %v1465 = vmul.f32 %v1447, 1.442695
  %v1466 = vpow.pop %v1465
  %v1467 = vmul.f32 %v1448, 1.442695
  %v1468 = vpow.pop %v1467
  %v1469 = vmul.f32 %v1449, 1.442695
  %v1470 = vpow.pop %v1469
  %v1471 = vmul.f32 %v1450, 1.442695
  %v1472 = vpow.pop %v1471
  %v1473 = vmul.f32 %v1451, 1.442695
  %v1474 = vpow.pop %v1473
  %v1475 = vmul.f32 %v1452, 1.442695
  %v1476 = vpow.pop %v1475
  %v1477 = vsub.f32 %v1462, 1.0
  %v1478 = vsub.f32 %v1464, 1.0
  %v1479 = vsub.f32 %v1466, 1.0
  %v1480 = vsub.f32 %v1468, 1.0
  %v1481 = vsub.f32 %v1470, 1.0
  %v1482 = vsub.f32 %v1472, 1.0
  %v1483 = vsub.f32 %v1474, 1.0
  %v1484 = vsub.f32 %v1476, 1.0
  %v1485 = vmul.f32 %v1477, 1.6732632
  %v1486 = vmul.f32 %v1478, 1.6732632
  %v1487 = vmul.f32 %v1479, 1.6732632
  %v1488 = vmul.f32 %v1480, 1.6732632
  %v1489 = vmul.f32 %v1481, 1.6732632
  %v1490 = vmul.f32 %v1482, 1.6732632
  %v1491 = vmul.f32 %v1483, 1.6732632
  %v1492 = vmul.f32 %v1484, 1.6732632
  %v1493 = vsel %vm1453, %v1445, %v1485
  %v1494 = vsel %vm1454, %v1446, %v1486
  %v1495 = vsel %vm1455, %v1447, %v1487
  %v1496 = vsel %vm1456, %v1448, %v1488
  %v1497 = vsel %vm1457, %v1449, %v1489
  %v1498 = vsel %vm1458, %v1450, %v1490
  %v1499 = vsel %vm1459, %v1451, %v1491
  %v1500 = vsel %vm1460, %v1452, %v1492
  %v1501 = vmul.f32 %v1493, 1.050701
  %v1502 = vmul.f32 %v1494, 1.050701
  %v1503 = vmul.f32 %v1495, 1.050701
  %v1504 = vmul.f32 %v1496, 1.050701
  %v1505 = vmul.f32 %v1497, 1.050701
  %v1506 = vmul.f32 %v1498, 1.050701
  %v1507 = vmul.f32 %v1499, 1.050701
  %v1508 = vmul.f32 %v1500, 1.050701
  %v1509 = vld [vmem:[%s4] sm:$0x1]
  %v1511 = vlaneseq
  %v1512 = vshrl.u32 %v1511, 7
  %v1513 = vsub.s32 0, %v1512
  %v1514 = vrot.slane %v1509, %v1513
  %1515 = vrot.lane.b32.xlu0 %v1514, 112
  %v1516 = vpop.permute.xlu0 %1515
  %v1518 = vadd.f32 %v1301, %v1516
  %v1519 = vadd.f32 %v1310, %v1516
  %v1520 = vadd.f32 %v1319, %v1516
  %v1521 = vadd.f32 %v1328, %v1516
  %v1522 = vadd.f32 %v1337, %v1516
  %v1523 = vadd.f32 %v1346, %v1516
  %v1524 = vadd.f32 %v1355, %v1516
  %v1525 = vadd.f32 %v1364, %v1516
  %vm1526 = vcmp.gt.f32.partialorder %v1518, 0.0
  %vm1527 = vcmp.gt.f32.partialorder %v1519, 0.0
  %vm1528 = vcmp.gt.f32.partialorder %v1520, 0.0
  %vm1529 = vcmp.gt.f32.partialorder %v1521, 0.0
  %vm1530 = vcmp.gt.f32.partialorder %v1522, 0.0
  %vm1531 = vcmp.gt.f32.partialorder %v1523, 0.0
  %vm1532 = vcmp.gt.f32.partialorder %v1524, 0.0
  %vm1533 = vcmp.gt.f32.partialorder %v1525, 0.0
  %v1534 = vmul.f32 %v1518, 1.442695
  %v1535 = vpow.pop %v1534
  %v1536 = vmul.f32 %v1519, 1.442695
  %v1537 = vpow.pop %v1536
  %v1538 = vmul.f32 %v1520, 1.442695
  %v1539 = vpow.pop %v1538
  %v1540 = vmul.f32 %v1521, 1.442695
  %v1541 = vpow.pop %v1540
  %v1542 = vmul.f32 %v1522, 1.442695
  %v1543 = vpow.pop %v1542
  %v1544 = vmul.f32 %v1523, 1.442695
  %v1545 = vpow.pop %v1544
  %v1546 = vmul.f32 %v1524, 1.442695
  %v1547 = vpow.pop %v1546
  %v1548 = vmul.f32 %v1525, 1.442695
  %v1549 = vpow.pop %v1548
  %v1550 = vsub.f32 %v1535, 1.0
  %v1551 = vsub.f32 %v1537, 1.0
  %v1552 = vsub.f32 %v1539, 1.0
  %v1553 = vsub.f32 %v1541, 1.0
  %v1554 = vsub.f32 %v1543, 1.0
  %v1555 = vsub.f32 %v1545, 1.0
  %v1556 = vsub.f32 %v1547, 1.0
  %v1557 = vsub.f32 %v1549, 1.0
  %v1558 = vmul.f32 %v1550, 1.6732632
  %v1559 = vmul.f32 %v1551, 1.6732632
  %v1560 = vmul.f32 %v1552, 1.6732632
  %v1561 = vmul.f32 %v1553, 1.6732632
  %v1562 = vmul.f32 %v1554, 1.6732632
  %v1563 = vmul.f32 %v1555, 1.6732632
  %v1564 = vmul.f32 %v1556, 1.6732632
  %v1565 = vmul.f32 %v1557, 1.6732632
  %v1566 = vsel %vm1526, %v1518, %v1558
  %v1567 = vsel %vm1527, %v1519, %v1559
  %v1568 = vsel %vm1528, %v1520, %v1560
  %v1569 = vsel %vm1529, %v1521, %v1561
  %v1570 = vsel %vm1530, %v1522, %v1562
  %v1571 = vsel %vm1531, %v1523, %v1563
  %v1572 = vsel %vm1532, %v1524, %v1564
  %v1573 = vsel %vm1533, %v1525, %v1565
  %v1574 = vmul.f32 %v1566, 1.050701
  %v1575 = vmul.f32 %v1567, 1.050701
  %v1576 = vmul.f32 %v1568, 1.050701
  %v1577 = vmul.f32 %v1569, 1.050701
  %v1578 = vmul.f32 %v1570, 1.050701
  %v1579 = vmul.f32 %v1571, 1.050701
  %v1580 = vmul.f32 %v1572, 1.050701
  %v1581 = vmul.f32 %v1573, 1.050701
  %v1582 = vld [vmem:[%s5] sm:$0xff]
  %v1583 = vld [vmem:[%s5 + $0x8] sm:$0xff]
  %v1584 = vld [vmem:[%s6] sm:$0xff]
  %v1585 = vld [vmem:[%s6 + $0x8] sm:$0xff]
  %v1594 = vrot.slane %v1502, 7
  %vm1595 = vcmask 1041409
  %v1596 = vsel %vm1595, %v1594, %v1501
  %v1597 = vrot.slane %v1503, 6
  %vm1598 = vcmask 1042434
  %v1599 = vsel %vm1598, %v1597, %v1596
  %v1600 = vrot.slane %v1504, 5
  %vm1601 = vcmask 1043459
  %v1602 = vsel %vm1601, %v1600, %v1599
  %v1603 = vrot.slane %v1505, 4
  %vm1604 = vcmask 1044484
  %v1605 = vsel %vm1604, %v1603, %v1602
  %v1606 = vrot.slane %v1506, 3
  %vm1607 = vcmask 1045509
  %v1608 = vsel %vm1607, %v1606, %v1605
  %v1609 = vrot.slane %v1507, 2
  %vm1610 = vcmask 1046534
  %v1611 = vsel %vm1610, %v1609, %v1608
  %v1612 = vrot.slane %v1508, 1
  %vm1613 = vcmask 1047559
  %v1614 = vsel %vm1613, %v1612, %v1611
  %1615 = vrot.lane.b32.xlu0 %v1614, 80
  %v1616 = vpop.permute.xlu0 %1615
  %v1617 = vsel %vm685, %v1616, 0
  %1619 = vmatprep.subr.mxu0 0.0
  %1620 = vmatpush1.msra.mxu0 %v1584
  %1621 = vmatprep.subr.mxu0 0.0
  %1622 = vmatpush1.msra.mxu0 %v1585
  %1623 = vmatprep.subr.mxu0 0.0
  %1624 = vmatpush1.msra.mxu0 0.0
  %1625 = vmatprep.subr.mxu0 0.0
  %1626 = vmatpush1.msra.mxu0 0.0
  %1627 = vmatprep.subr.mxu0 0.0
  %1628 = vmatpush1.msra.mxu0 0.0
  %1629 = vmatprep.subr.mxu0 0.0
  %1630 = vmatpush1.msra.mxu0 0.0
  %1631 = vmatprep.subr.mxu0 0.0
  %1632 = vmatpush1.msra.mxu0 0.0
  %1633 = vmatprep.subr.mxu0 0.0
  %1634 = vmatpush1.msra.mxu0 0.0
  %1635 = vmatprep.subr.mxu0 0.0
  %1636 = vmatpush1.msra.mxu0 0.0
  %1637 = vmatprep.subr.mxu0 0.0
  %1638 = vmatpush1.msra.mxu0 0.0
  %1639 = vmatprep.subr.mxu0 0.0
  %1640 = vmatpush1.msra.mxu0 0.0
  %1641 = vmatprep.subr.mxu0 0.0
  %1642 = vmatpush1.msra.mxu0 0.0
  %1643 = vmatprep.subr.mxu0 0.0
  %1644 = vmatpush1.msra.mxu0 0.0
  %1645 = vmatprep.subr.mxu0 0.0
  %1646 = vmatpush1.msra.mxu0 0.0
  %1647 = vmatprep.subr.mxu0 0.0
  %1648 = vmatpush1.msra.mxu0 0.0
  %1649 = vmatprep.subr.mxu0 0.0
  %1650 = vmatpush1.msra.mxu0 0.0
  %1651 = vmatprep.subr.mxu0 0.0
  %1652 = vmatpush1.msra.mxu0 0.0
  %1653 = vmatprep.subr.mxu0 0.0
  %1654 = vmatpush1.msra.mxu0 0.0
  %1655 = vmatprep.subr.mxu0 0.0
  %1656 = vmatpush1.msra.mxu0 0.0
  %1657 = vmatprep.subr.mxu0 0.0
  %1658 = vmatpush1.msra.mxu0 0.0
  %1659 = vmatprep.subr.mxu0 0.0
  %1660 = vmatpush1.msra.mxu0 0.0
  %1661 = vmatprep.subr.mxu0 0.0
  %1662 = vmatpush1.msra.mxu0 0.0
  %1663 = vmatprep.subr.mxu0 0.0
  %1664 = vmatpush1.msra.mxu0 0.0
  %1665 = vmatprep.subr.mxu0 0.0
  %1666 = vmatpush1.msra.mxu0 0.0
  %1667 = vmatprep.subr.mxu0 0.0
  %1668 = vmatpush1.msra.mxu0 0.0
  %1669 = vmatprep.subr.mxu0 0.0
  %1670 = vmatpush1.msra.mxu0 0.0
  %1671 = vmatprep.subr.mxu0 0.0
  %1672 = vmatpush1.msra.mxu0 0.0
  %1673 = vmatprep.subr.mxu0 0.0
  %1674 = vmatpush1.msra.mxu0 0.0
  %1675 = vmatprep.subr.mxu0 0.0
  %1676 = vmatpush1.msra.mxu0 0.0
  %1677 = vmatprep.subr.mxu0 0.0
  %1678 = vmatpush1.msra.mxu0 0.0
  %1679 = vmatprep.subr.mxu0 0.0
  %1680 = vmatpush1.msra.mxu0 0.0
  %1681 = vmatprep.subr.mxu0 0.0
  %1682 = vmatpush1.msra.mxu0 0.0
  %1683 = vmatprep.mubr.f32.mxu0 0.0
  %1684 = vmatmul.mubr.f32.gmra.mrb[0].mxu0 %v1617
  %v1685 = vpop.f32.mrb[0].mxu0
  %v1686 = vadd.f32 0.0, %v1685
  %v1687 = vpop.f32.mrb[0].mxu0
  %1688 = vdwg.mxu0
  %v1697 = vrot.slane %v1429, 7
  %v1698 = vsel %vm1595, %v1697, %v1428
  %v1699 = vrot.slane %v1430, 6
  %v1700 = vsel %vm1598, %v1699, %v1698
  %v1701 = vrot.slane %v1431, 5
  %v1702 = vsel %vm1601, %v1701, %v1700
  %v1703 = vrot.slane %v1432, 4
  %v1704 = vsel %vm1604, %v1703, %v1702
  %v1705 = vrot.slane %v1433, 3
  %v1706 = vsel %vm1607, %v1705, %v1704
  %v1707 = vrot.slane %v1434, 2
  %v1708 = vsel %vm1610, %v1707, %v1706
  %v1709 = vrot.slane %v1435, 1
  %v1710 = vsel %vm1613, %v1709, %v1708
  %v1711 = vsel %vm685, %v1710, 0
  %1713 = vmatprep.subr.mxu0 0.0
  %1714 = vmatpush1.msra.mxu0 %v1582
  %1715 = vmatprep.subr.mxu0 0.0
  %1716 = vmatpush1.msra.mxu0 %v1583
  %1717 = vmatprep.subr.mxu0 0.0
  %1718 = vmatpush1.msra.mxu0 0.0
  %1719 = vmatprep.subr.mxu0 0.0
  %1720 = vmatpush1.msra.mxu0 0.0
  %1721 = vmatprep.subr.mxu0 0.0
  %1722 = vmatpush1.msra.mxu0 0.0
  %1723 = vmatprep.subr.mxu0 0.0
  %1724 = vmatpush1.msra.mxu0 0.0
  %1725 = vmatprep.subr.mxu0 0.0
  %1726 = vmatpush1.msra.mxu0 0.0
  %1727 = vmatprep.subr.mxu0 0.0
  %1728 = vmatpush1.msra.mxu0 0.0
  %1729 = vmatprep.subr.mxu0 0.0
  %1730 = vmatpush1.msra.mxu0 0.0
  %1731 = vmatprep.subr.mxu0 0.0
  %1732 = vmatpush1.msra.mxu0 0.0
  %1733 = vmatprep.subr.mxu0 0.0
  %1734 = vmatpush1.msra.mxu0 0.0
  %1735 = vmatprep.subr.mxu0 0.0
  %1736 = vmatpush1.msra.mxu0 0.0
  %1737 = vmatprep.subr.mxu0 0.0
  %1738 = vmatpush1.msra.mxu0 0.0
  %1739 = vmatprep.subr.mxu0 0.0
  %1740 = vmatpush1.msra.mxu0 0.0
  %1741 = vmatprep.subr.mxu0 0.0
  %1742 = vmatpush1.msra.mxu0 0.0
  %1743 = vmatprep.subr.mxu0 0.0
  %1744 = vmatpush1.msra.mxu0 0.0
  %1745 = vmatprep.subr.mxu0 0.0
  %1746 = vmatpush1.msra.mxu0 0.0
  %1747 = vmatprep.subr.mxu0 0.0
  %1748 = vmatpush1.msra.mxu0 0.0
  %1749 = vmatprep.subr.mxu0 0.0
  %1750 = vmatpush1.msra.mxu0 0.0
  %1751 = vmatprep.subr.mxu0 0.0
  %1752 = vmatpush1.msra.mxu0 0.0
  %1753 = vmatprep.subr.mxu0 0.0
  %1754 = vmatpush1.msra.mxu0 0.0
  %1755 = vmatprep.subr.mxu0 0.0
  %1756 = vmatpush1.msra.mxu0 0.0
  %1757 = vmatprep.subr.mxu0 0.0
  %1758 = vmatpush1.msra.mxu0 0.0
  %1759 = vmatprep.subr.mxu0 0.0
  %1760 = vmatpush1.msra.mxu0 0.0
  %1761 = vmatprep.subr.mxu0 0.0
  %1762 = vmatpush1.msra.mxu0 0.0
  %1763 = vmatprep.subr.mxu0 0.0
  %1764 = vmatpush1.msra.mxu0 0.0
  %1765 = vmatprep.subr.mxu0 0.0
  %1766 = vmatpush1.msra.mxu0 0.0
  %1767 = vmatprep.subr.mxu0 0.0
  %1768 = vmatpush1.msra.mxu0 0.0
  %1769 = vmatprep.subr.mxu0 0.0
  %1770 = vmatpush1.msra.mxu0 0.0
  %1771 = vmatprep.subr.mxu0 0.0
  %1772 = vmatpush1.msra.mxu0 0.0
  %1773 = vmatprep.subr.mxu0 0.0
  %1774 = vmatpush1.msra.mxu0 0.0
  %1775 = vmatprep.subr.mxu0 0.0
  %1776 = vmatpush1.msra.mxu0 0.0
  %1777 = vmatprep.mubr.f32.mxu0 0.0
  %1778 = vmatmul.mubr.f32.gmra.mrb[0].mxu0 %v1711
  %v1779 = vpop.f32.mrb[0].mxu0
  %v1780 = vadd.f32 %v1686, %v1779
  %v1781 = vpop.f32.mrb[0].mxu0
  %1782 = vdwg.mxu0
  %v1783 = vld [vmem:[%s7] sm:$0xff]
  %v1784 = vld [vmem:[%s7 + $0x8] sm:$0xff]
  %v1793 = vrot.slane %v1575, 7
  %v1794 = vsel %vm1595, %v1793, %v1574
  %v1795 = vrot.slane %v1576, 6
  %v1796 = vsel %vm1598, %v1795, %v1794
  %v1797 = vrot.slane %v1577, 5
  %v1798 = vsel %vm1601, %v1797, %v1796
  %v1799 = vrot.slane %v1578, 4
  %v1800 = vsel %vm1604, %v1799, %v1798
  %v1801 = vrot.slane %v1579, 3
  %v1802 = vsel %vm1607, %v1801, %v1800
  %v1803 = vrot.slane %v1580, 2
  %v1804 = vsel %vm1610, %v1803, %v1802
  %v1805 = vrot.slane %v1581, 1
  %v1806 = vsel %vm1613, %v1805, %v1804
  %1807 = vrot.lane.b32.xlu0 %v1806, 16
  %v1808 = vpop.permute.xlu0 %1807
  %v1809 = vsel %vm685, %v1808, 0
  %1811 = vmatprep.subr.mxu0 0.0
  %1812 = vmatpush1.msra.mxu0 %v1783
  %1813 = vmatprep.subr.mxu0 0.0
  %1814 = vmatpush1.msra.mxu0 %v1784
  %1815 = vmatprep.subr.mxu0 0.0
  %1816 = vmatpush1.msra.mxu0 0.0
  %1817 = vmatprep.subr.mxu0 0.0
  %1818 = vmatpush1.msra.mxu0 0.0
  %1819 = vmatprep.subr.mxu0 0.0
  %1820 = vmatpush1.msra.mxu0 0.0
  %1821 = vmatprep.subr.mxu0 0.0
  %1822 = vmatpush1.msra.mxu0 0.0
  %1823 = vmatprep.subr.mxu0 0.0
  %1824 = vmatpush1.msra.mxu0 0.0
  %1825 = vmatprep.subr.mxu0 0.0
  %1826 = vmatpush1.msra.mxu0 0.0
  %1827 = vmatprep.subr.mxu0 0.0
  %1828 = vmatpush1.msra.mxu0 0.0
  %1829 = vmatprep.subr.mxu0 0.0
  %1830 = vmatpush1.msra.mxu0 0.0
  %1831 = vmatprep.subr.mxu0 0.0
  %1832 = vmatpush1.msra.mxu0 0.0
  %1833 = vmatprep.subr.mxu0 0.0
  %1834 = vmatpush1.msra.mxu0 0.0
  %1835 = vmatprep.subr.mxu0 0.0
  %1836 = vmatpush1.msra.mxu0 0.0
  %1837 = vmatprep.subr.mxu0 0.0
  %1838 = vmatpush1.msra.mxu0 0.0
  %1839 = vmatprep.subr.mxu0 0.0
  %1840 = vmatpush1.msra.mxu0 0.0
  %1841 = vmatprep.subr.mxu0 0.0
  %1842 = vmatpush1.msra.mxu0 0.0
  %1843 = vmatprep.subr.mxu0 0.0
  %1844 = vmatpush1.msra.mxu0 0.0
  %1845 = vmatprep.subr.mxu0 0.0
  %1846 = vmatpush1.msra.mxu0 0.0
  %1847 = vmatprep.subr.mxu0 0.0
  %1848 = vmatpush1.msra.mxu0 0.0
  %1849 = vmatprep.subr.mxu0 0.0
  %1850 = vmatpush1.msra.mxu0 0.0
  %1851 = vmatprep.subr.mxu0 0.0
  %1852 = vmatpush1.msra.mxu0 0.0
  %1853 = vmatprep.subr.mxu0 0.0
  %1854 = vmatpush1.msra.mxu0 0.0
  %1855 = vmatprep.subr.mxu0 0.0
  %1856 = vmatpush1.msra.mxu0 0.0
  %1857 = vmatprep.subr.mxu0 0.0
  %1858 = vmatpush1.msra.mxu0 0.0
  %1859 = vmatprep.subr.mxu0 0.0
  %1860 = vmatpush1.msra.mxu0 0.0
  %1861 = vmatprep.subr.mxu0 0.0
  %1862 = vmatpush1.msra.mxu0 0.0
  %1863 = vmatprep.subr.mxu0 0.0
  %1864 = vmatpush1.msra.mxu0 0.0
  %1865 = vmatprep.subr.mxu0 0.0
  %1866 = vmatpush1.msra.mxu0 0.0
  %1867 = vmatprep.subr.mxu0 0.0
  %1868 = vmatpush1.msra.mxu0 0.0
  %1869 = vmatprep.subr.mxu0 0.0
  %1870 = vmatpush1.msra.mxu0 0.0
  %1871 = vmatprep.subr.mxu0 0.0
  %1872 = vmatpush1.msra.mxu0 0.0
  %1873 = vmatprep.subr.mxu0 0.0
  %1874 = vmatpush1.msra.mxu0 0.0
  %1875 = vmatprep.mubr.f32.mxu0 0.0
  %1876 = vmatmul.mubr.f32.gmra.mrb[0].mxu0 %v1809
  %v1877 = vpop.f32.mrb[0].mxu0
  %v1878 = vadd.f32 0.0, %v1877
  %v1879 = vpop.f32.mrb[0].mxu0
  %1880 = vdwg.mxu0
  %v1881 = vadd.f32 %v1780, %v1878
  %v1882 = vld [vmem:[%s8] sm:$0x1]
  %v1884 = vlaneseq
  %v1885 = vshrl.u32 %v1884, 7
  %v1886 = vsub.s32 0, %v1885
  %v1887 = vrot.slane %v1882, %v1886
  %v1889 = vadd.f32 %v1881, %v1887
  %vm1890 = vcmask 31744
  %1891 = vst.msk [vmem:[%s9] sm:$0xff] %vm1890, %v1889
  // Predicated region
  $region38: #{tpu_custom_call.1} parent=0 // pred_check
    _
  $region39: #{tpu_custom_call.1} parent=0 // pred_check_branch
    %1893 = sbr.rel (0) target = $region41
  $region40: #{tpu_custom_call.1} parent=0 // pred_region
    _
  $region41: #{tpu_custom_call.1} parent=0 // pred_fallthru
    _
  // Predicated region
  $region42: #{tpu_custom_call.1} parent=0 // pred_check
    _
  $region43: #{tpu_custom_call.1} parent=0 // pred_check_branch
    %1895 = sbr.rel (0) target = $region45
  $region44: #{tpu_custom_call.1} parent=0 // pred_region
    _
  $region45: #{tpu_custom_call.1} parent=0 // pred_fallthru
    _

</llo_original>
